<compile_context>
chip_gen: v7x
topology: tpu7x:2x2x1
jax: 0.10.0
libtpu: 0.0.40
codegen_flags: <defaults>
</compile_context>

<pallas_src>
import functools

import jax
import jax.numpy as jnp
from jax.experimental import pallas as pl
from jax.experimental.pallas import tpu as pltpu


# ----------------------------- Pallas kernel ------------------------------- #
def vae_kernel(in_ref, w_ref, b_ref, out_ref, *,
               input_dim, latent_dim, hidden_dim, out_pad):
    f32 = jnp.float32
    bf16 = jnp.bfloat16

    inp = in_ref[...]                       # (bm, 128) f32: [x | eps | h_dec | 0]
    b = b_ref[...]                          # (8, 128)  f32 zero-padded biases

    # --- Encoder MLP (bf16 operands, f32 accumulation) -----------------------
    # Padded lane columns of the LHS only ever hit zero-padded weight rows, so the
    # whole input slab can be fed straight to the first matmul.
    x = inp.astype(bf16)
    h1 = jnp.maximum(jnp.dot(x,  w_ref[0], preferred_element_type=f32) + b[0:1, :], 0.0).astype(bf16)
    h2 = jnp.maximum(jnp.dot(h1, w_ref[1], preferred_element_type=f32) + b[1:2, :], 0.0).astype(bf16)
    h3 = jnp.maximum(jnp.dot(h2, w_ref[2], preferred_element_type=f32) + b[2:3, :], 0.0).astype(bf16)

    # --- fused mu/logvar head + reparameterization (f32) ----------------------
    head = jnp.dot(h3, w_ref[3], preferred_element_type=f32) + b[3:4, :]
    mu = head[:, :latent_dim]
    logvar = head[:, latent_dim:2 * latent_dim]
    eps = inp[:, input_dim:input_dim + latent_dim]
    z = (jnp.exp(0.5 * logvar) * eps + mu).astype(bf16)        # (bm, latent)

    # --- Decoder: cat(z, h_dec) @ Wd1 as split matmuls (no in-kernel concat) --
    h_dec = inp[:, input_dim + latent_dim:input_dim + latent_dim + hidden_dim].astype(bf16)
    wd1z = w_ref[4][:latent_dim, :]
    wd1h = w_ref[5][:hidden_dim, :]
    d1 = (jnp.dot(z, wd1z, preferred_element_type=f32)
          + jnp.dot(h_dec, wd1h, preferred_element_type=f32)
          + b[4:5, :])
    d1 = jnp.maximum(d1, 0.0).astype(bf16)
    d2 = jnp.dot(d1, w_ref[6], preferred_element_type=f32) + b[5:6, :]

    # sigmoid on the EUP: exp + approximate reciprocal
    recon = pl.reciprocal(1.0 + jnp.exp(-d2[:, :input_dim]), approx=True)

    # single lane-dense, 128-lane packed store: [recon | logvar | mu | 0]
    pad = jnp.zeros((recon.shape[0], out_pad), f32)
    out_ref[...] = jnp.concatenate([recon, logvar, mu, pad], axis=-1)


# ------------------------------ Wrapper ------------------------------------ #
def _tensorcores_per_device():
    try:
        n = getattr(jax.devices()[0], "num_cores", 1)
        return max(int(n), 1)
    except Exception:
        return 1


@functools.partial(jax.jit, static_argnames=("block_m",))
def vae_forward(x, eps, h_dec, params, *, block_m=256):
    """x: (B, input_dim) float32. Returns (reconstructed, logvar, mu)."""
    B, input_dim = x.shape
    latent_dim = params["w_mu"].shape[1]
    hidden_dim = params["w_d1h"].shape[0]

    P = 128
    in_width = input_dim + latent_dim + hidden_dim
    out_dim = input_dim + 2 * latent_dim
    widths = (input_dim, latent_dim, hidden_dim, in_width, out_dim,
              params["w1"].shape[1], params["w2"].shape[1], params["w3"].shape[1],
              params["w_d1z"].shape[1], params["w_d2"].shape[1])
    assert max(widths) <= P, "kernel assumes all layer widths fit in one 128-lane tile"
    assert B % 16 == 0, "batch must be a multiple of 16"

    # --- batch tile: fewest possible grid steps (one per TensorCore) ----------
    cores = _tensorcores_per_device()
    bm = min(block_m, B)
    if cores > 1 and B // cores >= 16:
        bm = min(bm, B // cores)          # keep exactly `cores` parallel steps
    bm = max(16, (bm // 16) * 16)
    while B % bm:
        bm -= 16
    assert bm >= 16 and bm % 16 == 0 and B % bm == 0

    bf16, f32 = jnp.bfloat16, jnp.float32

    def padw(w):
        r, c = w.shape
        return jnp.pad(w.astype(bf16), ((0, P - r), (0, P - c)))

    def padb(b):
        v = b.reshape(-1).astype(f32)
        return jnp.pad(v, (0, P - v.shape[0]))

    # Encoder input is cat([x, zeros(B, hidden)], -1); the zero block multiplies the
    # last hidden_dim rows of w1 and contributes nothing, so drop those rows.
    w_head = jnp.concatenate([params["w_mu"], params["w_lv"]], axis=1)
    b_head = jnp.concatenate([params["b_mu"], params["b_lv"]], axis=1)

    w_slab = jnp.stack([
        padw(params["w1"][:input_dim]),
        padw(params["w2"]),
        padw(params["w3"]),
        padw(w_head),
        padw(params["w_d1z"]),
        padw(params["w_d1h"]),
        padw(params["w_d2"]),
    ])                                                        # (7, 128, 128) bf16
    b_slab = jnp.stack([
        padb(params["b1"]), padb(params["b2"]), padb(params["b3"]),
        padb(b_head), padb(params["b_d1"]), padb(params["b_d2"]),
        jnp.zeros((P,), f32), jnp.zeros((P,), f32),
    ])                                                        # (8, 128) f32

    in_slab = jnp.concatenate([x, eps, h_dec], axis=-1).astype(f32)
    in_slab = jnp.pad(in_slab, ((0, 0), (0, P - in_width)))   # (B, 128) f32

    kernel = functools.partial(
        vae_kernel, input_dim=input_dim, latent_dim=latent_dim,
        hidden_dim=hidden_dim, out_pad=P - out_dim)

    packed = pl.pallas_call(
        kernel,
        out_shape=jax.ShapeDtypeStruct((B, P), f32),
        grid=(B // bm,),
        in_specs=[
            pl.BlockSpec((bm, P), lambda i: (i, 0)),          # input slab: batch-tiled
            pl.BlockSpec(w_slab.shape, lambda i: (0, 0, 0)),  # weight slab: resident
            pl.BlockSpec(b_slab.shape, lambda i: (0, 0)),     # bias slab: resident
        ],
        out_specs=pl.BlockSpec((bm, P), lambda i: (i, 0)),
        compiler_params=pltpu.CompilerParams(
            dimension_semantics=("parallel",),
            vmem_limit_bytes=32 << 20,
        ),
    )(in_slab, w_slab, b_slab)

    recon = packed[:, :input_dim]
    logvar = packed[:, input_dim:input_dim + latent_dim]
    mu = packed[:, input_dim + latent_dim:out_dim]
    return recon, logvar, mu


# ------------------------- Deterministic params ----------------------------- #
def make_params(key, input_dim, hidden_dim, latent_dim):
    enc_in = input_dim + hidden_dim
    dec_in = latent_dim + hidden_dim

    dims = dict(
        w1=(enc_in, enc_in // 2), b1=(1, enc_in // 2),
        w2=(enc_in // 2, enc_in // 4), b2=(1, enc_in // 4),
        w3=(enc_in // 4, enc_in // 8), b3=(1, enc_in // 8),
        w_mu=(enc_in // 8, latent_dim), b_mu=(1, latent_dim),
        w_lv=(enc_in // 8, latent_dim), b_lv=(1, latent_dim),
        # decoder first Linear (in = latent+hidden) stored split: z-part / h-part
        w_d1z=(latent_dim, dec_in * 2), w_d1h=(hidden_dim, dec_in * 2), b_d1=(1, dec_in * 2),
        w_d2=(dec_in * 2, input_dim), b_d2=(1, input_dim),
    )

    params = {}
    for i, (name, shape) in enumerate(sorted(dims.items())):
        k = jax.random.fold_in(key, i)
        fan_in = shape[0] if name.startswith("w") else shape[1]
        scale = 1.0 / jnp.sqrt(jnp.float32(fan_in))
        params[name] = (scale * jax.random.normal(k, shape, jnp.float32)).astype(jnp.float32)
    return params


# -------------------------- Reference (mirrors kernel numerics) -------------- #
def vae_reference(x, eps, h_dec, params):
    """Same math as the module's forward; matmuls quantized to bf16 operands with
    f32 accumulation so it mirrors the kernel's numerics for a tight comparison."""
    bf16, f32 = jnp.bfloat16, jnp.float32

    def mm(a, w):
        return jnp.dot(a.astype(bf16), w.astype(bf16), preferred_element_type=f32)

    input_dim = x.shape[1]
    w1_x = params["w1"][:input_dim]          # zero-padded rows contribute nothing
    h1 = jax.nn.relu(mm(x, w1_x) + params["b1"])
    h2 = jax.nn.relu(mm(h1, params["w2"]) + params["b2"])
    h3 = jax.nn.relu(mm(h2, params["w3"]) + params["b3"])
    mu = mm(h3, params["w_mu"]) + params["b_mu"]
    logvar = mm(h3, params["w_lv"]) + params["b_lv"]
    z = jnp.exp(0.5 * logvar) * eps + mu
    d1 = jax.nn.relu(mm(z, params["w_d1z"]) + mm(h_dec, params["w_d1h"]) + params["b_d1"])
    recon = jax.nn.sigmoid(mm(d1, params["w_d2"]) + params["b_d2"])
    return recon, logvar, mu


# --------------------------------- main ------------------------------------- #
if __name__ == "__main__":
    # config: small shapes consistent with the module; batch tiled by the grid
    batch_size, input_dim, hidden_dim, latent_dim = 256, 64, 32, 16

    key = jax.random.PRNGKey(0)
    k_x, k_eps, k_h, k_p = jax.random.split(key, 4)

    x = jax.random.normal(k_x, (batch_size, input_dim), jnp.float32)
    eps = jax.random.normal(k_eps, (batch_size, latent_dim), jnp.float32)   # randn_like(std)
    h_dec = jax.random.normal(k_h, (batch_size, hidden_dim), jnp.float32)   # decoder's randn h
    params = make_params(k_p, input_dim, hidden_dim, latent_dim)

    recon, logvar, mu = vae_forward(x, eps, h_dec, params)
    jax.block_until_ready((recon, logvar, mu))

    recon_r, logvar_r, mu_r = vae_reference(x, eps, h_dec, params)
    assert recon.shape == (batch_size, input_dim)
    assert logvar.shape == (batch_size, latent_dim) and mu.shape == (batch_size, latent_dim)
    assert jnp.allclose(mu, mu_r, atol=5e-3, rtol=5e-3)
    assert jnp.allclose(logvar, logvar_r, atol=5e-3, rtol=5e-3)
    assert jnp.allclose(recon, recon_r, atol=5e-3, rtol=5e-3)

    print("KERNEL_OK")
</pallas_src>

<mosaic_0001>
module attributes {stable_mosaic.version = 11 : i64} {
  func.func @vae_kernel(%arg0: i32, %arg1: memref<256x128xf32, #tpu.memory_space<vmem>>, %arg2: memref<7x128x128xbf16, #tpu.memory_space<vmem>>, %arg3: memref<8x128xf32, #tpu.memory_space<vmem>>, %arg4: memref<256x128xf32, #tpu.memory_space<vmem>>) attributes {dimension_semantics = [#tpu.dimension_semantics<parallel>], iteration_bounds = array<i64: 1>, scalar_prefetch = 0 : i64, scratch_operands = 0 : i64, tpu.core_type = #tpu.core_type<tc>, window_params = [{transform_indices = @transform_0, window_bounds = array<i64: 256, 128>}, {pipeline_mode = #tpu.pipeline_mode<synchronous>, transform_indices = @transform_1, window_bounds = array<i64: 7, 128, 128>}, {pipeline_mode = #tpu.pipeline_mode<synchronous>, transform_indices = @transform_2, window_bounds = array<i64: 8, 128>}, {transform_indices = @transform_3, window_bounds = array<i64: 256, 128>}]} {
    %c0 = arith.constant 0 : index
    %c0_0 = arith.constant 0 : index
    %0 = vector.load %arg1[%c0, %c0_0] : memref<256x128xf32, #tpu.memory_space<vmem>>, vector<256x128xf32>
    %c0_1 = arith.constant 0 : index
    %c0_2 = arith.constant 0 : index
    %1 = vector.load %arg3[%c0_1, %c0_2] : memref<8x128xf32, #tpu.memory_space<vmem>>, vector<8x128xf32>
    %2 = arith.truncf %0 : vector<256x128xf32> to vector<256x128xbf16>
    %c0_3 = arith.constant 0 : index
    %c0_4 = arith.constant 0 : index
    %c0_5 = arith.constant 0 : index
    %3 = vector.load %arg2[%c0_3, %c0_4, %c0_5] : memref<7x128x128xbf16, #tpu.memory_space<vmem>>, vector<1x128x128xbf16>
    %4 = vector.shape_cast %3 : vector<1x128x128xbf16> to vector<128x128xbf16>
    %cst = arith.constant dense<0.000000e+00> : vector<256x128xf32>
    %5 = tpu.matmul %2, %4, %cst {dimension_numbers = #tpu.dot_dimension_numbers<[1], [0], [0], [1], [0, 0, 1, 1], [], []>} : vector<256x128xbf16>, vector<128x128xbf16>, vector<256x128xf32> -> vector<256x128xf32>
    %6 = vector.extract_strided_slice %1 {offsets = [0, 0], sizes = [1, 128], strides = [1, 1]} : vector<8x128xf32> to vector<1x128xf32>
    %7 = vector.broadcast %6 : vector<1x128xf32> to vector<256x128xf32>
    %8 = arith.addf %5, %7 : vector<256x128xf32>
    %cst_6 = arith.constant 0.000000e+00 : f32
    %9 = vector.broadcast %cst_6 : f32 to vector<256x128xf32>
    %10 = arith.maximumf %8, %9 : vector<256x128xf32>
    %11 = arith.truncf %10 : vector<256x128xf32> to vector<256x128xbf16>
    %c1 = arith.constant 1 : index
    %c0_7 = arith.constant 0 : index
    %c0_8 = arith.constant 0 : index
    %12 = vector.load %arg2[%c1, %c0_7, %c0_8] : memref<7x128x128xbf16, #tpu.memory_space<vmem>>, vector<1x128x128xbf16>
    %13 = vector.shape_cast %12 : vector<1x128x128xbf16> to vector<128x128xbf16>
    %cst_9 = arith.constant dense<0.000000e+00> : vector<256x128xf32>
    %14 = tpu.matmul %11, %13, %cst_9 {dimension_numbers = #tpu.dot_dimension_numbers<[1], [0], [0], [1], [0, 0, 1, 1], [], []>} : vector<256x128xbf16>, vector<128x128xbf16>, vector<256x128xf32> -> vector<256x128xf32>
    %15 = vector.extract_strided_slice %1 {offsets = [1, 0], sizes = [1, 128], strides = [1, 1]} : vector<8x128xf32> to vector<1x128xf32>
    %16 = vector.broadcast %15 : vector<1x128xf32> to vector<256x128xf32>
    %17 = arith.addf %14, %16 : vector<256x128xf32>
    %cst_10 = arith.constant 0.000000e+00 : f32
    %18 = vector.broadcast %cst_10 : f32 to vector<256x128xf32>
    %19 = arith.maximumf %17, %18 : vector<256x128xf32>
    %20 = arith.truncf %19 : vector<256x128xf32> to vector<256x128xbf16>
    %c2 = arith.constant 2 : index
    %c0_11 = arith.constant 0 : index
    %c0_12 = arith.constant 0 : index
    %21 = vector.load %arg2[%c2, %c0_11, %c0_12] : memref<7x128x128xbf16, #tpu.memory_space<vmem>>, vector<1x128x128xbf16>
    %22 = vector.shape_cast %21 : vector<1x128x128xbf16> to vector<128x128xbf16>
    %cst_13 = arith.constant dense<0.000000e+00> : vector<256x128xf32>
    %23 = tpu.matmul %20, %22, %cst_13 {dimension_numbers = #tpu.dot_dimension_numbers<[1], [0], [0], [1], [0, 0, 1, 1], [], []>} : vector<256x128xbf16>, vector<128x128xbf16>, vector<256x128xf32> -> vector<256x128xf32>
    %24 = vector.extract_strided_slice %1 {offsets = [2, 0], sizes = [1, 128], strides = [1, 1]} : vector<8x128xf32> to vector<1x128xf32>
    %25 = vector.broadcast %24 : vector<1x128xf32> to vector<256x128xf32>
    %26 = arith.addf %23, %25 : vector<256x128xf32>
    %cst_14 = arith.constant 0.000000e+00 : f32
    %27 = vector.broadcast %cst_14 : f32 to vector<256x128xf32>
    %28 = arith.maximumf %26, %27 : vector<256x128xf32>
    %29 = arith.truncf %28 : vector<256x128xf32> to vector<256x128xbf16>
    %c3 = arith.constant 3 : index
    %c0_15 = arith.constant 0 : index
    %c0_16 = arith.constant 0 : index
    %30 = vector.load %arg2[%c3, %c0_15, %c0_16] : memref<7x128x128xbf16, #tpu.memory_space<vmem>>, vector<1x128x128xbf16>
    %31 = vector.shape_cast %30 : vector<1x128x128xbf16> to vector<128x128xbf16>
    %cst_17 = arith.constant dense<0.000000e+00> : vector<256x128xf32>
    %32 = tpu.matmul %29, %31, %cst_17 {dimension_numbers = #tpu.dot_dimension_numbers<[1], [0], [0], [1], [0, 0, 1, 1], [], []>} : vector<256x128xbf16>, vector<128x128xbf16>, vector<256x128xf32> -> vector<256x128xf32>
    %33 = vector.extract_strided_slice %1 {offsets = [3, 0], sizes = [1, 128], strides = [1, 1]} : vector<8x128xf32> to vector<1x128xf32>
    %34 = vector.broadcast %33 : vector<1x128xf32> to vector<256x128xf32>
    %35 = arith.addf %32, %34 : vector<256x128xf32>
    %36 = vector.extract_strided_slice %35 {offsets = [0, 0], sizes = [256, 16], strides = [1, 1]} : vector<256x128xf32> to vector<256x16xf32>
    %37 = vector.extract_strided_slice %35 {offsets = [0, 16], sizes = [256, 16], strides = [1, 1]} : vector<256x128xf32> to vector<256x16xf32>
    %38 = vector.extract_strided_slice %0 {offsets = [0, 64], sizes = [256, 16], strides = [1, 1]} : vector<256x128xf32> to vector<256x16xf32>
    %cst_18 = arith.constant 5.000000e-01 : f32
    %39 = vector.broadcast %cst_18 : f32 to vector<256x16xf32>
    %40 = arith.mulf %39, %37 : vector<256x16xf32>
    %41 = math.exp %40 : vector<256x16xf32>
    %42 = arith.mulf %41, %38 : vector<256x16xf32>
    %43 = arith.addf %42, %36 : vector<256x16xf32>
    %44 = arith.truncf %43 : vector<256x16xf32> to vector<256x16xbf16>
    %45 = vector.extract_strided_slice %0 {offsets = [0, 80], sizes = [256, 32], strides = [1, 1]} : vector<256x128xf32> to vector<256x32xf32>
    %46 = arith.truncf %45 : vector<256x32xf32> to vector<256x32xbf16>
    %c4 = arith.constant 4 : index
    %c0_19 = arith.constant 0 : index
    %c0_20 = arith.constant 0 : index
    %47 = vector.load %arg2[%c4, %c0_19, %c0_20] : memref<7x128x128xbf16, #tpu.memory_space<vmem>>, vector<1x128x128xbf16>
    %48 = vector.shape_cast %47 : vector<1x128x128xbf16> to vector<128x128xbf16>
    %49 = vector.extract_strided_slice %48 {offsets = [0, 0], sizes = [16, 128], strides = [1, 1]} : vector<128x128xbf16> to vector<16x128xbf16>
    %c5 = arith.constant 5 : index
    %c0_21 = arith.constant 0 : index
    %c0_22 = arith.constant 0 : index
    %50 = vector.load %arg2[%c5, %c0_21, %c0_22] : memref<7x128x128xbf16, #tpu.memory_space<vmem>>, vector<1x128x128xbf16>
    %51 = vector.shape_cast %50 : vector<1x128x128xbf16> to vector<128x128xbf16>
    %52 = vector.extract_strided_slice %51 {offsets = [0, 0], sizes = [32, 128], strides = [1, 1]} : vector<128x128xbf16> to vector<32x128xbf16>
    %cst_23 = arith.constant dense<0.000000e+00> : vector<256x128xf32>
    %53 = tpu.matmul %44, %49, %cst_23 {dimension_numbers = #tpu.dot_dimension_numbers<[1], [0], [0], [1], [0, 0, 1, 1], [], []>} : vector<256x16xbf16>, vector<16x128xbf16>, vector<256x128xf32> -> vector<256x128xf32>
    %cst_24 = arith.constant dense<0.000000e+00> : vector<256x128xf32>
    %54 = tpu.matmul %46, %52, %cst_24 {dimension_numbers = #tpu.dot_dimension_numbers<[1], [0], [0], [1], [0, 0, 1, 1], [], []>} : vector<256x32xbf16>, vector<32x128xbf16>, vector<256x128xf32> -> vector<256x128xf32>
    %55 = arith.addf %53, %54 : vector<256x128xf32>
    %56 = vector.extract_strided_slice %1 {offsets = [4, 0], sizes = [1, 128], strides = [1, 1]} : vector<8x128xf32> to vector<1x128xf32>
    %57 = vector.broadcast %56 : vector<1x128xf32> to vector<256x128xf32>
    %58 = arith.addf %55, %57 : vector<256x128xf32>
    %cst_25 = arith.constant 0.000000e+00 : f32
    %59 = vector.broadcast %cst_25 : f32 to vector<256x128xf32>
    %60 = arith.maximumf %58, %59 : vector<256x128xf32>
    %61 = arith.truncf %60 : vector<256x128xf32> to vector<256x128xbf16>
    %c6 = arith.constant 6 : index
    %c0_26 = arith.constant 0 : index
    %c0_27 = arith.constant 0 : index
    %62 = vector.load %arg2[%c6, %c0_26, %c0_27] : memref<7x128x128xbf16, #tpu.memory_space<vmem>>, vector<1x128x128xbf16>
    %63 = vector.shape_cast %62 : vector<1x128x128xbf16> to vector<128x128xbf16>
    %cst_28 = arith.constant dense<0.000000e+00> : vector<256x128xf32>
    %64 = tpu.matmul %61, %63, %cst_28 {dimension_numbers = #tpu.dot_dimension_numbers<[1], [0], [0], [1], [0, 0, 1, 1], [], []>} : vector<256x128xbf16>, vector<128x128xbf16>, vector<256x128xf32> -> vector<256x128xf32>
    %65 = vector.extract_strided_slice %1 {offsets = [5, 0], sizes = [1, 128], strides = [1, 1]} : vector<8x128xf32> to vector<1x128xf32>
    %66 = vector.broadcast %65 : vector<1x128xf32> to vector<256x128xf32>
    %67 = arith.addf %64, %66 : vector<256x128xf32>
    %68 = vector.extract_strided_slice %67 {offsets = [0, 0], sizes = [256, 64], strides = [1, 1]} : vector<256x128xf32> to vector<256x64xf32>
    %cst_29 = arith.constant 0.000000e+00 : f32
    %69 = vector.broadcast %cst_29 : f32 to vector<256x64xf32>
    %70 = arith.subf %69, %68 : vector<256x64xf32>
    %71 = math.exp %70 : vector<256x64xf32>
    %cst_30 = arith.constant 1.000000e+00 : f32
    %72 = vector.broadcast %cst_30 : f32 to vector<256x64xf32>
    %73 = arith.addf %72, %71 : vector<256x64xf32>
    %74 = tpu.reciprocal %73 {approx = true} : vector<256x64xf32> -> vector<256x64xf32>
    %cst_31 = arith.constant 0.000000e+00 : f32
    %75 = vector.broadcast %cst_31 : f32 to vector<256x32xf32>
    %76 = tpu.concatenate %74, %37, %36, %75 in 1 : vector<256x64xf32>, vector<256x16xf32>, vector<256x16xf32>, vector<256x32xf32> -> vector<256x128xf32>
    %c0_32 = arith.constant 0 : index
    %c0_33 = arith.constant 0 : index
    %77 = vector.load %arg4[%c0_32, %c0_33] : memref<256x128xf32, #tpu.memory_space<vmem>>, vector<256x128xf32>
    tpu.vector_store %arg4[%c0_32, %c0_33], %76 {strides = array<i32>} : memref<256x128xf32, #tpu.memory_space<vmem>>, vector<256x128xf32>,
    return
  }
  func.func @transform_0(%arg0: i32) -> (i32, i32) {
    %c0_i32 = arith.constant 0 : i32
    %c0_i32_0 = arith.constant 0 : i32
    return %arg0, %c0_i32 : i32, i32
  }
  func.func @transform_1(%arg0: i32) -> (i32, i32, i32) {
    %c0_i32 = arith.constant 0 : i32
    %c0_i32_0 = arith.constant 0 : i32
    %c0_i32_1 = arith.constant 0 : i32
    %c0_i32_2 = arith.constant 0 : i32
    return %c0_i32, %c0_i32_0, %c0_i32_1 : i32, i32, i32
  }
  func.func @transform_2(%arg0: i32) -> (i32, i32) {
    %c0_i32 = arith.constant 0 : i32
    %c0_i32_0 = arith.constant 0 : i32
    %c0_i32_1 = arith.constant 0 : i32
    return %c0_i32, %c0_i32_0 : i32, i32
  }
  func.func @transform_3(%arg0: i32) -> (i32, i32) {
    %c0_i32 = arith.constant 0 : i32
    %c0_i32_0 = arith.constant 0 : i32
    return %arg0, %c0_i32 : i32, i32
  }
}

</mosaic_0001>

<llo_original>
// kernel: vae_forward.1
$region0: #{vae_forward.1}
  #allocation0 [shape = 'u32[]', space=smem, size = 0x4, offset = 0x4, fixed_abs, tag = 'smem constant byte address 0x4 - core index']
  #allocation1 [shape = 'u32[144,128]{1,0:T(1,128)}', space=vmem, size = 0x12000, scoped, tag = 'internal scratch']
  %s0 = inlined_call_operand.vmem [shape: f32[256,128], index: 0, kind: input, shape index: {}]
  %s1 = inlined_call_operand.vmem [shape: bf16[7,128,128], index: 1, kind: input, shape index: {}]
  %s2 = inlined_call_operand.vmem [shape: f32[8,128], index: 2, kind: input, shape index: {}]
  %s3 = inlined_call_operand.vmem [shape: f32[256,128], index: 3, kind: output, shape index: {}]
  %s4 = sld [smem:[#allocation0]]
  $region22: #{vae_forward.1} parent=0
    _
  %s6 = ssub.s32 1, %s4
  %s7 = scalar_select 0, %s6, %s4
  // Predicated region
  $region2: #{vae_forward.1} parent=0 // pred_check
    _
  $region3: #{vae_forward.1} parent=0 // pred_check_branch
    %9 = sbr.rel (0) target = $region5
  $region4: #{vae_forward.1} parent=0 // pred_region
    _
  $region5: #{vae_forward.1} parent=0 // pred_fallthru
    _
  // Predicated region
  $region6: #{vae_forward.1} parent=0 // pred_check
    _
  $region7: #{vae_forward.1} parent=0 // pred_check_branch
    %11 = sbr.rel (0) target = $region9
  $region8: #{vae_forward.1} parent=0 // pred_region
    _
  $region9: #{vae_forward.1} parent=0 // pred_fallthru
    _
  // Predicated region
  $region10: #{vae_forward.1} parent=0 // pred_check
    _
  $region11: #{vae_forward.1} parent=0 // pred_check_branch
    %13 = sbr.rel (0) target = $region13
  $region12: #{vae_forward.1} parent=0 // pred_region
    _
  $region13: #{vae_forward.1} parent=0 // pred_fallthru
    _
  %v15 = vld [vmem:[%s0] sm:$0xff]
  %v16 = vld [vmem:[%s0 + $0x8] sm:$0xff]
  %v17 = vld [vmem:[%s0 + $0x10] sm:$0xff]
  %v18 = vld [vmem:[%s0 + $0x18] sm:$0xff]
  %v19 = vld [vmem:[%s0 + $0x20] sm:$0xff]
  %v20 = vld [vmem:[%s0 + $0x28] sm:$0xff]
  %v21 = vld [vmem:[%s0 + $0x30] sm:$0xff]
  %v22 = vld [vmem:[%s0 + $0x38] sm:$0xff]
  %v23 = vld [vmem:[%s0 + $0x40] sm:$0xff]
  %v24 = vld [vmem:[%s0 + $0x48] sm:$0xff]
  %v25 = vld [vmem:[%s0 + $0x50] sm:$0xff]
  %v26 = vld [vmem:[%s0 + $0x58] sm:$0xff]
  %v27 = vld [vmem:[%s0 + $0x60] sm:$0xff]
  %v28 = vld [vmem:[%s0 + $0x68] sm:$0xff]
  %v29 = vld [vmem:[%s0 + $0x70] sm:$0xff]
  %v30 = vld [vmem:[%s0 + $0x78] sm:$0xff]
  %v31 = vld [vmem:[%s0 + $0x80] sm:$0xff]
  %v32 = vld [vmem:[%s0 + $0x88] sm:$0xff]
  %v33 = vld [vmem:[%s0 + $0x90] sm:$0xff]
  %v34 = vld [vmem:[%s0 + $0x98] sm:$0xff]
  %v35 = vld [vmem:[%s0 + $0xa0] sm:$0xff]
  %v36 = vld [vmem:[%s0 + $0xa8] sm:$0xff]
  %v37 = vld [vmem:[%s0 + $0xb0] sm:$0xff]
  %v38 = vld [vmem:[%s0 + $0xb8] sm:$0xff]
  %v39 = vld [vmem:[%s0 + $0xc0] sm:$0xff]
  %v40 = vld [vmem:[%s0 + $0xc8] sm:$0xff]
  %v41 = vld [vmem:[%s0 + $0xd0] sm:$0xff]
  %v42 = vld [vmem:[%s0 + $0xd8] sm:$0xff]
  %v43 = vld [vmem:[%s0 + $0xe0] sm:$0xff]
  %v44 = vld [vmem:[%s0 + $0xe8] sm:$0xff]
  %v45 = vld [vmem:[%s0 + $0xf0] sm:$0xff]
  %v46 = vld [vmem:[%s0 + $0xf8] sm:$0xff]
  %v47 = vld [vmem:[%s2] sm:$0xff]
  %v48 = vpack.c.bf16 %v16, %v15
  %v49 = vpack.c.bf16 %v18, %v17
  %v50 = vpack.c.bf16 %v20, %v19
  %v51 = vpack.c.bf16 %v22, %v21
  %v52 = vpack.c.bf16 %v24, %v23
  %v53 = vpack.c.bf16 %v26, %v25
  %v54 = vpack.c.bf16 %v28, %v27
  %v55 = vpack.c.bf16 %v30, %v29
  %v56 = vpack.c.bf16 %v32, %v31
  %v57 = vpack.c.bf16 %v34, %v33
  %v58 = vpack.c.bf16 %v36, %v35
  %v59 = vpack.c.bf16 %v38, %v37
  %v60 = vpack.c.bf16 %v40, %v39
  %v61 = vpack.c.bf16 %v42, %v41
  %v62 = vpack.c.bf16 %v44, %v43
  %v63 = vpack.c.bf16 %v46, %v45
  %v64 = vld [vmem:[%s1] sm:$0xf]
  %v65 = vld [vmem:[%s1 + $0x4] sm:$0xf]
  %v66 = vld [vmem:[%s1 + $0x8] sm:$0xf]
  %v67 = vld [vmem:[%s1 + $0xc] sm:$0xf]
  %v68 = vld [vmem:[%s1 + $0x10] sm:$0xf]
  %v69 = vld [vmem:[%s1 + $0x14] sm:$0xf]
  %v70 = vld [vmem:[%s1 + $0x18] sm:$0xf]
  %v71 = vld [vmem:[%s1 + $0x1c] sm:$0xf]
  %v72 = vld [vmem:[%s1 + $0x20] sm:$0xf]
  %v73 = vld [vmem:[%s1 + $0x24] sm:$0xf]
  %v74 = vld [vmem:[%s1 + $0x28] sm:$0xf]
  %v75 = vld [vmem:[%s1 + $0x2c] sm:$0xf]
  %v76 = vld [vmem:[%s1 + $0x30] sm:$0xf]
  %v77 = vld [vmem:[%s1 + $0x34] sm:$0xf]
  %v78 = vld [vmem:[%s1 + $0x38] sm:$0xf]
  %v79 = vld [vmem:[%s1 + $0x3c] sm:$0xf]
  %v80 = vlaneseq
  %v81 = vshrl.u32 %v80, 7
  %v82 = vsub.s32 0, %v81
  %v83 = vrot.slane %v47, %v82
  %v100 = vunpack.c.l.b16 %v64
  %v101 = vunpack.c.l.b16 %v65
  %v102 = vunpack.c.l.b16 %v66
  %v103 = vunpack.c.l.b16 %v67
  %v104 = vunpack.c.l.b16 %v68
  %v105 = vunpack.c.l.b16 %v69
  %v106 = vunpack.c.l.b16 %v70
  %v107 = vunpack.c.l.b16 %v71
  %v108 = vunpack.c.l.b16 %v72
  %v109 = vunpack.c.l.b16 %v73
  %v110 = vunpack.c.l.b16 %v74
  %v111 = vunpack.c.l.b16 %v75
  %v112 = vunpack.c.l.b16 %v76
  %v113 = vunpack.c.l.b16 %v77
  %v114 = vunpack.c.l.b16 %v78
  %v115 = vunpack.c.l.b16 %v79
  %v116 = vpack.c.b16 %v101, %v100
  %v117 = vpack.c.b16 %v103, %v102
  %v118 = vpack.c.b16 %v105, %v104
  %v119 = vpack.c.b16 %v107, %v106
  %v120 = vpack.c.b16 %v109, %v108
  %v121 = vpack.c.b16 %v111, %v110
  %v122 = vpack.c.b16 %v113, %v112
  %v123 = vpack.c.b16 %v115, %v114
  %132 = vmatprep.subr.bf16.mxu0 0
  %133 = vmatpush1.bf16.msra.mxu0 %v116
  %134 = vmatprep.subr.bf16.mxu0 0
  %135 = vmatpush1.bf16.msra.mxu0 %v117
  %136 = vmatprep.subr.bf16.mxu0 0
  %137 = vmatpush1.bf16.msra.mxu0 %v118
  %138 = vmatprep.subr.bf16.mxu0 0
  %139 = vmatpush1.bf16.msra.mxu0 %v119
  %140 = vmatprep.subr.bf16.mxu0 0
  %141 = vmatpush1.bf16.msra.mxu0 %v120
  %142 = vmatprep.subr.bf16.mxu0 0
  %143 = vmatpush1.bf16.msra.mxu0 %v121
  %144 = vmatprep.subr.bf16.mxu0 0
  %145 = vmatpush1.bf16.msra.mxu0 %v122
  %146 = vmatprep.subr.bf16.mxu0 0
  %147 = vmatpush1.bf16.msra.mxu0 %v123
  %148 = vmatprep.subr.bf16.mxu0 0
  %149 = vmatpush1.bf16.msra.mxu0 0
  %150 = vmatprep.subr.bf16.mxu0 0
  %151 = vmatpush1.bf16.msra.mxu0 0
  %152 = vmatprep.subr.bf16.mxu0 0
  %153 = vmatpush1.bf16.msra.mxu0 0
  %154 = vmatprep.subr.bf16.mxu0 0
  %155 = vmatpush1.bf16.msra.mxu0 0
  %156 = vmatprep.subr.bf16.mxu0 0
  %157 = vmatpush1.bf16.msra.mxu0 0
  %158 = vmatprep.subr.bf16.mxu0 0
  %159 = vmatpush1.bf16.msra.mxu0 0
  %160 = vmatprep.subr.bf16.mxu0 0
  %161 = vmatpush1.bf16.msra.mxu0 0
  %162 = vmatprep.subr.bf16.mxu0 0
  %163 = vmatpush1.bf16.msra.mxu0 0
  %164 = vmatprep.mubr.bf16.mxu0 0
  %165 = vmatmul.mubr.bf16.gmra.mrb[0].mxu0 %v48
  %v166 = vpop.f32.mrb[0].mxu0
  %v167 = vadd.f32 %v83, %v166
  %v168 = vpop.f32.mrb[0].mxu0
  %v169 = vpop.f32.mrb[0].mxu0
  %v170 = vadd.f32 %v83, %v169
  %v171 = vpop.f32.mrb[0].mxu0
  %172 = vmatprep.mubr.bf16.mxu0 0
  %173 = vmatmul.mubr.bf16.gmra.mrb[0].mxu0 %v49
  %v174 = vpop.f32.mrb[0].mxu0
  %v175 = vadd.f32 %v83, %v174
  %v176 = vpop.f32.mrb[0].mxu0
  %v177 = vpop.f32.mrb[0].mxu0
  %v178 = vadd.f32 %v83, %v177
  %v179 = vpop.f32.mrb[0].mxu0
  %180 = vmatprep.mubr.bf16.mxu0 0
  %181 = vmatmul.mubr.bf16.gmra.mrb[0].mxu0 %v50
  %v182 = vpop.f32.mrb[0].mxu0
  %v183 = vadd.f32 %v83, %v182
  %v184 = vpop.f32.mrb[0].mxu0
  %v185 = vpop.f32.mrb[0].mxu0
  %v186 = vadd.f32 %v83, %v185
  %v187 = vpop.f32.mrb[0].mxu0
  %188 = vmatprep.mubr.bf16.mxu0 0
  %189 = vmatmul.mubr.bf16.gmra.mrb[0].mxu0 %v51
  %v190 = vpop.f32.mrb[0].mxu0
  %v191 = vadd.f32 %v83, %v190
  %v192 = vpop.f32.mrb[0].mxu0
  %v193 = vpop.f32.mrb[0].mxu0
  %v194 = vadd.f32 %v83, %v193
  %v195 = vpop.f32.mrb[0].mxu0
  %196 = vmatprep.mubr.bf16.mxu0 0
  %197 = vmatmul.mubr.bf16.gmra.mrb[0].mxu0 %v52
  %v198 = vpop.f32.mrb[0].mxu0
  %v199 = vadd.f32 %v83, %v198
  %v200 = vpop.f32.mrb[0].mxu0
  %v201 = vpop.f32.mrb[0].mxu0
  %v202 = vadd.f32 %v83, %v201
  %v203 = vpop.f32.mrb[0].mxu0
  %204 = vmatprep.mubr.bf16.mxu0 0
  %205 = vmatmul.mubr.bf16.gmra.mrb[0].mxu0 %v53
  %v206 = vpop.f32.mrb[0].mxu0
  %v207 = vadd.f32 %v83, %v206
  %v208 = vpop.f32.mrb[0].mxu0
  %v209 = vpop.f32.mrb[0].mxu0
  %v210 = vadd.f32 %v83, %v209
  %v211 = vpop.f32.mrb[0].mxu0
  %212 = vmatprep.mubr.bf16.mxu0 0
  %213 = vmatmul.mubr.bf16.gmra.mrb[0].mxu0 %v54
  %v214 = vpop.f32.mrb[0].mxu0
  %v215 = vadd.f32 %v83, %v214
  %v216 = vpop.f32.mrb[0].mxu0
  %v217 = vpop.f32.mrb[0].mxu0
  %v218 = vadd.f32 %v83, %v217
  %v219 = vpop.f32.mrb[0].mxu0
  %220 = vmatprep.mubr.bf16.mxu0 0
  %221 = vmatmul.mubr.bf16.gmra.mrb[0].mxu0 %v55
  %v222 = vpop.f32.mrb[0].mxu0
  %v223 = vadd.f32 %v83, %v222
  %v224 = vpop.f32.mrb[0].mxu0
  %v225 = vpop.f32.mrb[0].mxu0
  %v226 = vadd.f32 %v83, %v225
  %v227 = vpop.f32.mrb[0].mxu0
  %228 = vmatprep.mubr.bf16.mxu0 0
  %229 = vmatmul.mubr.bf16.gmra.mrb[0].mxu0 %v56
  %v230 = vpop.f32.mrb[0].mxu0
  %v231 = vadd.f32 %v83, %v230
  %v232 = vpop.f32.mrb[0].mxu0
  %v233 = vpop.f32.mrb[0].mxu0
  %v234 = vadd.f32 %v83, %v233
  %v235 = vpop.f32.mrb[0].mxu0
  %236 = vmatprep.mubr.bf16.mxu0 0
  %237 = vmatmul.mubr.bf16.gmra.mrb[0].mxu0 %v57
  %v238 = vpop.f32.mrb[0].mxu0
  %v239 = vadd.f32 %v83, %v238
  %v240 = vpop.f32.mrb[0].mxu0
  %v241 = vpop.f32.mrb[0].mxu0
  %v242 = vadd.f32 %v83, %v241
  %v243 = vpop.f32.mrb[0].mxu0
  %244 = vmatprep.mubr.bf16.mxu0 0
  %245 = vmatmul.mubr.bf16.gmra.mrb[0].mxu0 %v58
  %v246 = vpop.f32.mrb[0].mxu0
  %v247 = vadd.f32 %v83, %v246
  %v248 = vpop.f32.mrb[0].mxu0
  %v249 = vpop.f32.mrb[0].mxu0
  %v250 = vadd.f32 %v83, %v249
  %v251 = vpop.f32.mrb[0].mxu0
  %252 = vmatprep.mubr.bf16.mxu0 0
  %253 = vmatmul.mubr.bf16.gmra.mrb[0].mxu0 %v59
  %v254 = vpop.f32.mrb[0].mxu0
  %v255 = vadd.f32 %v83, %v254
  %v256 = vpop.f32.mrb[0].mxu0
  %v257 = vpop.f32.mrb[0].mxu0
  %v258 = vadd.f32 %v83, %v257
  %v259 = vpop.f32.mrb[0].mxu0
  %260 = vmatprep.mubr.bf16.mxu0 0
  %261 = vmatmul.mubr.bf16.gmra.mrb[0].mxu0 %v60
  %v262 = vpop.f32.mrb[0].mxu0
  %v263 = vadd.f32 %v83, %v262
  %v264 = vpop.f32.mrb[0].mxu0
  %v265 = vpop.f32.mrb[0].mxu0
  %v266 = vadd.f32 %v83, %v265
  %v267 = vpop.f32.mrb[0].mxu0
  %268 = vmatprep.mubr.bf16.mxu0 0
  %269 = vmatmul.mubr.bf16.gmra.mrb[0].mxu0 %v61
  %v270 = vpop.f32.mrb[0].mxu0
  %v271 = vadd.f32 %v83, %v270
  %v272 = vpop.f32.mrb[0].mxu0
  %v273 = vpop.f32.mrb[0].mxu0
  %v274 = vadd.f32 %v83, %v273
  %v275 = vpop.f32.mrb[0].mxu0
  %276 = vmatprep.mubr.bf16.mxu0 0
  %277 = vmatmul.mubr.bf16.gmra.mrb[0].mxu0 %v62
  %v278 = vpop.f32.mrb[0].mxu0
  %v279 = vadd.f32 %v83, %v278
  %v280 = vpop.f32.mrb[0].mxu0
  %v281 = vpop.f32.mrb[0].mxu0
  %v282 = vadd.f32 %v83, %v281
  %v283 = vpop.f32.mrb[0].mxu0
  %284 = vmatprep.mubr.bf16.mxu0 0
  %285 = vmatmul.mubr.bf16.gmra.mrb[0].mxu0 %v63
  %v286 = vpop.f32.mrb[0].mxu0
  %v287 = vadd.f32 %v83, %v286
  %v288 = vpop.f32.mrb[0].mxu0
  %v289 = vpop.f32.mrb[0].mxu0
  %v290 = vadd.f32 %v83, %v289
  %v291 = vpop.f32.mrb[0].mxu0
  %292 = vdwg.mxu0
  %v293 = vmax.f32 %v167, 0.0
  %v294 = vmax.f32 %v170, 0.0
  %v295 = vmax.f32 %v175, 0.0
  %v296 = vmax.f32 %v178, 0.0
  %v297 = vmax.f32 %v183, 0.0
  %v298 = vmax.f32 %v186, 0.0
  %v299 = vmax.f32 %v191, 0.0
  %v300 = vmax.f32 %v194, 0.0
  %v301 = vmax.f32 %v199, 0.0
  %v302 = vmax.f32 %v202, 0.0
  %v303 = vmax.f32 %v207, 0.0
  %v304 = vmax.f32 %v210, 0.0
  %v305 = vmax.f32 %v215, 0.0
  %v306 = vmax.f32 %v218, 0.0
  %v307 = vmax.f32 %v223, 0.0
  %v308 = vmax.f32 %v226, 0.0
  %v309 = vmax.f32 %v231, 0.0
  %v310 = vmax.f32 %v234, 0.0
  %v311 = vmax.f32 %v239, 0.0
  %v312 = vmax.f32 %v242, 0.0
  %v313 = vmax.f32 %v247, 0.0
  %v314 = vmax.f32 %v250, 0.0
  %v315 = vmax.f32 %v255, 0.0
  %v316 = vmax.f32 %v258, 0.0
  %v317 = vmax.f32 %v263, 0.0
  %v318 = vmax.f32 %v266, 0.0
  %v319 = vmax.f32 %v271, 0.0
  %v320 = vmax.f32 %v274, 0.0
  %v321 = vmax.f32 %v279, 0.0
  %v322 = vmax.f32 %v282, 0.0
  %v323 = vmax.f32 %v287, 0.0
  %v324 = vmax.f32 %v290, 0.0
  %v325 = vpack.c.bf16 %v294, %v293
  %v326 = vpack.c.bf16 %v296, %v295
  %v327 = vpack.c.bf16 %v298, %v297
  %v328 = vpack.c.bf16 %v300, %v299
  %v329 = vpack.c.bf16 %v302, %v301
  %v330 = vpack.c.bf16 %v304, %v303
  %v331 = vpack.c.bf16 %v306, %v305
  %v332 = vpack.c.bf16 %v308, %v307
  %v333 = vpack.c.bf16 %v310, %v309
  %v334 = vpack.c.bf16 %v312, %v311
  %v335 = vpack.c.bf16 %v314, %v313
  %v336 = vpack.c.bf16 %v316, %v315
  %v337 = vpack.c.bf16 %v318, %v317
  %v338 = vpack.c.bf16 %v320, %v319
  %v339 = vpack.c.bf16 %v322, %v321
  %v340 = vpack.c.bf16 %v324, %v323
  %s341 = scalar_lea.vmem %s1, 64
  %v342 = vld [vmem:[%s341] sm:$0xf]
  %v343 = vld [vmem:[%s341 + $0x4] sm:$0xf]
  %v344 = vld [vmem:[%s341 + $0x8] sm:$0xf]
  %v345 = vld [vmem:[%s341 + $0xc] sm:$0xf]
  %v346 = vld [vmem:[%s341 + $0x10] sm:$0xf]
  %v347 = vld [vmem:[%s341 + $0x14] sm:$0xf]
  %v348 = vld [vmem:[%s341 + $0x18] sm:$0xf]
  %v349 = vld [vmem:[%s341 + $0x1c] sm:$0xf]
  %v350 = vld [vmem:[%s341 + $0x20] sm:$0xf]
  %v351 = vld [vmem:[%s341 + $0x24] sm:$0xf]
  %v352 = vld [vmem:[%s341 + $0x28] sm:$0xf]
  %v353 = vld [vmem:[%s341 + $0x2c] sm:$0xf]
  %v354 = vld [vmem:[%s341 + $0x30] sm:$0xf]
  %v355 = vld [vmem:[%s341 + $0x34] sm:$0xf]
  %v356 = vld [vmem:[%s341 + $0x38] sm:$0xf]
  %v357 = vld [vmem:[%s341 + $0x3c] sm:$0xf]
  %v358 = vlaneseq
  %v359 = vshrl.u32 %v358, 7
  %v360 = vsub.s32 1, %v359
  %v361 = vrot.slane %v47, %v360
  %v378 = vunpack.c.l.b16 %v342
  %v379 = vunpack.c.l.b16 %v343
  %v380 = vunpack.c.l.b16 %v344
  %v381 = vunpack.c.l.b16 %v345
  %v382 = vunpack.c.l.b16 %v346
  %v383 = vunpack.c.l.b16 %v347
  %v384 = vunpack.c.l.b16 %v348
  %v385 = vunpack.c.l.b16 %v349
  %v386 = vunpack.c.l.b16 %v350
  %v387 = vunpack.c.l.b16 %v351
  %v388 = vunpack.c.l.b16 %v352
  %v389 = vunpack.c.l.b16 %v353
  %v390 = vunpack.c.l.b16 %v354
  %v391 = vunpack.c.l.b16 %v355
  %v392 = vunpack.c.l.b16 %v356
  %v393 = vunpack.c.l.b16 %v357
  %v394 = vpack.c.b16 %v379, %v378
  %v395 = vpack.c.b16 %v381, %v380
  %v396 = vpack.c.b16 %v383, %v382
  %v397 = vpack.c.b16 %v385, %v384
  %v398 = vpack.c.b16 %v387, %v386
  %v399 = vpack.c.b16 %v389, %v388
  %v400 = vpack.c.b16 %v391, %v390
  %v401 = vpack.c.b16 %v393, %v392
  %410 = vmatprep.subr.bf16.mxu0 0
  %411 = vmatpush1.bf16.msra.mxu0 %v394
  %412 = vmatprep.subr.bf16.mxu0 0
  %413 = vmatpush1.bf16.msra.mxu0 %v395
  %414 = vmatprep.subr.bf16.mxu0 0
  %415 = vmatpush1.bf16.msra.mxu0 %v396
  %416 = vmatprep.subr.bf16.mxu0 0
  %417 = vmatpush1.bf16.msra.mxu0 %v397
  %418 = vmatprep.subr.bf16.mxu0 0
  %419 = vmatpush1.bf16.msra.mxu0 %v398
  %420 = vmatprep.subr.bf16.mxu0 0
  %421 = vmatpush1.bf16.msra.mxu0 %v399
  %422 = vmatprep.subr.bf16.mxu0 0
  %423 = vmatpush1.bf16.msra.mxu0 %v400
  %424 = vmatprep.subr.bf16.mxu0 0
  %425 = vmatpush1.bf16.msra.mxu0 %v401
  %426 = vmatprep.subr.bf16.mxu0 0
  %427 = vmatpush1.bf16.msra.mxu0 0
  %428 = vmatprep.subr.bf16.mxu0 0
  %429 = vmatpush1.bf16.msra.mxu0 0
  %430 = vmatprep.subr.bf16.mxu0 0
  %431 = vmatpush1.bf16.msra.mxu0 0
  %432 = vmatprep.subr.bf16.mxu0 0
  %433 = vmatpush1.bf16.msra.mxu0 0
  %434 = vmatprep.subr.bf16.mxu0 0
  %435 = vmatpush1.bf16.msra.mxu0 0
  %436 = vmatprep.subr.bf16.mxu0 0
  %437 = vmatpush1.bf16.msra.mxu0 0
  %438 = vmatprep.subr.bf16.mxu0 0
  %439 = vmatpush1.bf16.msra.mxu0 0
  %440 = vmatprep.subr.bf16.mxu0 0
  %441 = vmatpush1.bf16.msra.mxu0 0
  %442 = vmatprep.mubr.bf16.mxu0 0
  %443 = vmatmul.mubr.bf16.gmra.mrb[0].mxu0 %v325
  %v444 = vpop.f32.mrb[0].mxu0
  %v445 = vadd.f32 %v361, %v444
  %v446 = vpop.f32.mrb[0].mxu0
  %v447 = vpop.f32.mrb[0].mxu0
  %v448 = vadd.f32 %v361, %v447
  %v449 = vpop.f32.mrb[0].mxu0
  %450 = vmatprep.mubr.bf16.mxu0 0
  %451 = vmatmul.mubr.bf16.gmra.mrb[0].mxu0 %v326
  %v452 = vpop.f32.mrb[0].mxu0
  %v453 = vadd.f32 %v361, %v452
  %v454 = vpop.f32.mrb[0].mxu0
  %v455 = vpop.f32.mrb[0].mxu0
  %v456 = vadd.f32 %v361, %v455
  %v457 = vpop.f32.mrb[0].mxu0
  %458 = vmatprep.mubr.bf16.mxu0 0
  %459 = vmatmul.mubr.bf16.gmra.mrb[0].mxu0 %v327
  %v460 = vpop.f32.mrb[0].mxu0
  %v461 = vadd.f32 %v361, %v460
  %v462 = vpop.f32.mrb[0].mxu0
  %v463 = vpop.f32.mrb[0].mxu0
  %v464 = vadd.f32 %v361, %v463
  %v465 = vpop.f32.mrb[0].mxu0
  %466 = vmatprep.mubr.bf16.mxu0 0
  %467 = vmatmul.mubr.bf16.gmra.mrb[0].mxu0 %v328
  %v468 = vpop.f32.mrb[0].mxu0
  %v469 = vadd.f32 %v361, %v468
  %v470 = vpop.f32.mrb[0].mxu0
  %v471 = vpop.f32.mrb[0].mxu0
  %v472 = vadd.f32 %v361, %v471
  %v473 = vpop.f32.mrb[0].mxu0
  %474 = vmatprep.mubr.bf16.mxu0 0
  %475 = vmatmul.mubr.bf16.gmra.mrb[0].mxu0 %v329
  %v476 = vpop.f32.mrb[0].mxu0
  %v477 = vadd.f32 %v361, %v476
  %v478 = vpop.f32.mrb[0].mxu0
  %v479 = vpop.f32.mrb[0].mxu0
  %v480 = vadd.f32 %v361, %v479
  %v481 = vpop.f32.mrb[0].mxu0
  %482 = vmatprep.mubr.bf16.mxu0 0
  %483 = vmatmul.mubr.bf16.gmra.mrb[0].mxu0 %v330
  %v484 = vpop.f32.mrb[0].mxu0
  %v485 = vadd.f32 %v361, %v484
  %v486 = vpop.f32.mrb[0].mxu0
  %v487 = vpop.f32.mrb[0].mxu0
  %v488 = vadd.f32 %v361, %v487
  %v489 = vpop.f32.mrb[0].mxu0
  %490 = vmatprep.mubr.bf16.mxu0 0
  %491 = vmatmul.mubr.bf16.gmra.mrb[0].mxu0 %v331
  %v492 = vpop.f32.mrb[0].mxu0
  %v493 = vadd.f32 %v361, %v492
  %v494 = vpop.f32.mrb[0].mxu0
  %v495 = vpop.f32.mrb[0].mxu0
  %v496 = vadd.f32 %v361, %v495
  %v497 = vpop.f32.mrb[0].mxu0
  %498 = vmatprep.mubr.bf16.mxu0 0
  %499 = vmatmul.mubr.bf16.gmra.mrb[0].mxu0 %v332
  %v500 = vpop.f32.mrb[0].mxu0
  %v501 = vadd.f32 %v361, %v500
  %v502 = vpop.f32.mrb[0].mxu0
  %v503 = vpop.f32.mrb[0].mxu0
  %v504 = vadd.f32 %v361, %v503
  %v505 = vpop.f32.mrb[0].mxu0
  %506 = vmatprep.mubr.bf16.mxu0 0
  %507 = vmatmul.mubr.bf16.gmra.mrb[0].mxu0 %v333
  %v508 = vpop.f32.mrb[0].mxu0
  %v509 = vadd.f32 %v361, %v508
  %v510 = vpop.f32.mrb[0].mxu0
  %v511 = vpop.f32.mrb[0].mxu0
  %v512 = vadd.f32 %v361, %v511
  %v513 = vpop.f32.mrb[0].mxu0
  %514 = vmatprep.mubr.bf16.mxu0 0
  %515 = vmatmul.mubr.bf16.gmra.mrb[0].mxu0 %v334
  %v516 = vpop.f32.mrb[0].mxu0
  %v517 = vadd.f32 %v361, %v516
  %v518 = vpop.f32.mrb[0].mxu0
  %v519 = vpop.f32.mrb[0].mxu0
  %v520 = vadd.f32 %v361, %v519
  %v521 = vpop.f32.mrb[0].mxu0
  %522 = vmatprep.mubr.bf16.mxu0 0
  %523 = vmatmul.mubr.bf16.gmra.mrb[0].mxu0 %v335
  %v524 = vpop.f32.mrb[0].mxu0
  %v525 = vadd.f32 %v361, %v524
  %v526 = vpop.f32.mrb[0].mxu0
  %v527 = vpop.f32.mrb[0].mxu0
  %v528 = vadd.f32 %v361, %v527
  %v529 = vpop.f32.mrb[0].mxu0
  %530 = vmatprep.mubr.bf16.mxu0 0
  %531 = vmatmul.mubr.bf16.gmra.mrb[0].mxu0 %v336
  %v532 = vpop.f32.mrb[0].mxu0
  %v533 = vadd.f32 %v361, %v532
  %v534 = vpop.f32.mrb[0].mxu0
  %v535 = vpop.f32.mrb[0].mxu0
  %v536 = vadd.f32 %v361, %v535
  %v537 = vpop.f32.mrb[0].mxu0
  %538 = vmatprep.mubr.bf16.mxu0 0
  %539 = vmatmul.mubr.bf16.gmra.mrb[0].mxu0 %v337
  %v540 = vpop.f32.mrb[0].mxu0
  %v541 = vadd.f32 %v361, %v540
  %v542 = vpop.f32.mrb[0].mxu0
  %v543 = vpop.f32.mrb[0].mxu0
  %v544 = vadd.f32 %v361, %v543
  %v545 = vpop.f32.mrb[0].mxu0
  %546 = vmatprep.mubr.bf16.mxu0 0
  %547 = vmatmul.mubr.bf16.gmra.mrb[0].mxu0 %v338
  %v548 = vpop.f32.mrb[0].mxu0
  %v549 = vadd.f32 %v361, %v548
  %v550 = vpop.f32.mrb[0].mxu0
  %v551 = vpop.f32.mrb[0].mxu0
  %v552 = vadd.f32 %v361, %v551
  %v553 = vpop.f32.mrb[0].mxu0
  %554 = vmatprep.mubr.bf16.mxu0 0
  %555 = vmatmul.mubr.bf16.gmra.mrb[0].mxu0 %v339
  %v556 = vpop.f32.mrb[0].mxu0
  %v557 = vadd.f32 %v361, %v556
  %v558 = vpop.f32.mrb[0].mxu0
  %v559 = vpop.f32.mrb[0].mxu0
  %v560 = vadd.f32 %v361, %v559
  %v561 = vpop.f32.mrb[0].mxu0
  %562 = vmatprep.mubr.bf16.mxu0 0
  %563 = vmatmul.mubr.bf16.gmra.mrb[0].mxu0 %v340
  %v564 = vpop.f32.mrb[0].mxu0
  %v565 = vadd.f32 %v361, %v564
  %v566 = vpop.f32.mrb[0].mxu0
  %v567 = vpop.f32.mrb[0].mxu0
  %v568 = vadd.f32 %v361, %v567
  %v569 = vpop.f32.mrb[0].mxu0
  %570 = vdwg.mxu0
  %v571 = vmax.f32 %v445, 0.0
  %v572 = vmax.f32 %v448, 0.0
  %v573 = vmax.f32 %v453, 0.0
  %v574 = vmax.f32 %v456, 0.0
  %v575 = vmax.f32 %v461, 0.0
  %v576 = vmax.f32 %v464, 0.0
  %v577 = vmax.f32 %v469, 0.0
  %v578 = vmax.f32 %v472, 0.0
  %v579 = vmax.f32 %v477, 0.0
  %v580 = vmax.f32 %v480, 0.0
  %v581 = vmax.f32 %v485, 0.0
  %v582 = vmax.f32 %v488, 0.0
  %v583 = vmax.f32 %v493, 0.0
  %v584 = vmax.f32 %v496, 0.0
  %v585 = vmax.f32 %v501, 0.0
  %v586 = vmax.f32 %v504, 0.0
  %v587 = vmax.f32 %v509, 0.0
  %v588 = vmax.f32 %v512, 0.0
  %v589 = vmax.f32 %v517, 0.0
  %v590 = vmax.f32 %v520, 0.0
  %v591 = vmax.f32 %v525, 0.0
  %v592 = vmax.f32 %v528, 0.0
  %v593 = vmax.f32 %v533, 0.0
  %v594 = vmax.f32 %v536, 0.0
  %v595 = vmax.f32 %v541, 0.0
  %v596 = vmax.f32 %v544, 0.0
  %v597 = vmax.f32 %v549, 0.0
  %v598 = vmax.f32 %v552, 0.0
  %v599 = vmax.f32 %v557, 0.0
  %v600 = vmax.f32 %v560, 0.0
  %v601 = vmax.f32 %v565, 0.0
  %v602 = vmax.f32 %v568, 0.0
  %v603 = vpack.c.bf16 %v572, %v571
  %v604 = vpack.c.bf16 %v574, %v573
  %v605 = vpack.c.bf16 %v576, %v575
  %v606 = vpack.c.bf16 %v578, %v577
  %v607 = vpack.c.bf16 %v580, %v579
  %v608 = vpack.c.bf16 %v582, %v581
  %v609 = vpack.c.bf16 %v584, %v583
  %v610 = vpack.c.bf16 %v586, %v585
  %v611 = vpack.c.bf16 %v588, %v587
  %v612 = vpack.c.bf16 %v590, %v589
  %v613 = vpack.c.bf16 %v592, %v591
  %v614 = vpack.c.bf16 %v594, %v593
  %v615 = vpack.c.bf16 %v596, %v595
  %v616 = vpack.c.bf16 %v598, %v597
  %v617 = vpack.c.bf16 %v600, %v599
  %v618 = vpack.c.bf16 %v602, %v601
  %s619 = scalar_lea.vmem %s1, 128
  %v620 = vld [vmem:[%s619] sm:$0xf]
  %v621 = vld [vmem:[%s619 + $0x4] sm:$0xf]
  %v622 = vld [vmem:[%s619 + $0x8] sm:$0xf]
  %v623 = vld [vmem:[%s619 + $0xc] sm:$0xf]
  %v624 = vld [vmem:[%s619 + $0x10] sm:$0xf]
  %v625 = vld [vmem:[%s619 + $0x14] sm:$0xf]
  %v626 = vld [vmem:[%s619 + $0x18] sm:$0xf]
  %v627 = vld [vmem:[%s619 + $0x1c] sm:$0xf]
  %v628 = vld [vmem:[%s619 + $0x20] sm:$0xf]
  %v629 = vld [vmem:[%s619 + $0x24] sm:$0xf]
  %v630 = vld [vmem:[%s619 + $0x28] sm:$0xf]
  %v631 = vld [vmem:[%s619 + $0x2c] sm:$0xf]
  %v632 = vld [vmem:[%s619 + $0x30] sm:$0xf]
  %v633 = vld [vmem:[%s619 + $0x34] sm:$0xf]
  %v634 = vld [vmem:[%s619 + $0x38] sm:$0xf]
  %v635 = vld [vmem:[%s619 + $0x3c] sm:$0xf]
  %v636 = vlaneseq
  %v637 = vshrl.u32 %v636, 7
  %v638 = vsub.s32 2, %v637
  %v639 = vrot.slane %v47, %v638
  %v656 = vunpack.c.l.b16 %v620
  %v657 = vunpack.c.l.b16 %v621
  %v658 = vunpack.c.l.b16 %v622
  %v659 = vunpack.c.l.b16 %v623
  %v660 = vunpack.c.l.b16 %v624
  %v661 = vunpack.c.l.b16 %v625
  %v662 = vunpack.c.l.b16 %v626
  %v663 = vunpack.c.l.b16 %v627
  %v664 = vunpack.c.l.b16 %v628
  %v665 = vunpack.c.l.b16 %v629
  %v666 = vunpack.c.l.b16 %v630
  %v667 = vunpack.c.l.b16 %v631
  %v668 = vunpack.c.l.b16 %v632
  %v669 = vunpack.c.l.b16 %v633
  %v670 = vunpack.c.l.b16 %v634
  %v671 = vunpack.c.l.b16 %v635
  %v672 = vpack.c.b16 %v657, %v656
  %v673 = vpack.c.b16 %v659, %v658
  %v674 = vpack.c.b16 %v661, %v660
  %v675 = vpack.c.b16 %v663, %v662
  %v676 = vpack.c.b16 %v665, %v664
  %v677 = vpack.c.b16 %v667, %v666
  %v678 = vpack.c.b16 %v669, %v668
  %v679 = vpack.c.b16 %v671, %v670
  %688 = vmatprep.subr.bf16.mxu0 0
  %689 = vmatpush1.bf16.msra.mxu0 %v672
  %690 = vmatprep.subr.bf16.mxu0 0
  %691 = vmatpush1.bf16.msra.mxu0 %v673
  %692 = vmatprep.subr.bf16.mxu0 0
  %693 = vmatpush1.bf16.msra.mxu0 %v674
  %694 = vmatprep.subr.bf16.mxu0 0
  %695 = vmatpush1.bf16.msra.mxu0 %v675
  %696 = vmatprep.subr.bf16.mxu0 0
  %697 = vmatpush1.bf16.msra.mxu0 %v676
  %698 = vmatprep.subr.bf16.mxu0 0
  %699 = vmatpush1.bf16.msra.mxu0 %v677
  %700 = vmatprep.subr.bf16.mxu0 0
  %701 = vmatpush1.bf16.msra.mxu0 %v678
  %702 = vmatprep.subr.bf16.mxu0 0
  %703 = vmatpush1.bf16.msra.mxu0 %v679
  %704 = vmatprep.subr.bf16.mxu0 0
  %705 = vmatpush1.bf16.msra.mxu0 0
  %706 = vmatprep.subr.bf16.mxu0 0
  %707 = vmatpush1.bf16.msra.mxu0 0
  %708 = vmatprep.subr.bf16.mxu0 0
  %709 = vmatpush1.bf16.msra.mxu0 0
  %710 = vmatprep.subr.bf16.mxu0 0
  %711 = vmatpush1.bf16.msra.mxu0 0
  %712 = vmatprep.subr.bf16.mxu0 0
  %713 = vmatpush1.bf16.msra.mxu0 0
  %714 = vmatprep.subr.bf16.mxu0 0
  %715 = vmatpush1.bf16.msra.mxu0 0
  %716 = vmatprep.subr.bf16.mxu0 0
  %717 = vmatpush1.bf16.msra.mxu0 0
  %718 = vmatprep.subr.bf16.mxu0 0
  %719 = vmatpush1.bf16.msra.mxu0 0
  %720 = vmatprep.mubr.bf16.mxu0 0
  %721 = vmatmul.mubr.bf16.gmra.mrb[0].mxu0 %v603
  %v722 = vpop.f32.mrb[0].mxu0
  %v723 = vadd.f32 %v639, %v722
  %v724 = vpop.f32.mrb[0].mxu0
  %v725 = vpop.f32.mrb[0].mxu0
  %v726 = vadd.f32 %v639, %v725
  %v727 = vpop.f32.mrb[0].mxu0
  %728 = vmatprep.mubr.bf16.mxu0 0
  %729 = vmatmul.mubr.bf16.gmra.mrb[0].mxu0 %v604
  %v730 = vpop.f32.mrb[0].mxu0
  %v731 = vadd.f32 %v639, %v730
  %v732 = vpop.f32.mrb[0].mxu0
  %v733 = vpop.f32.mrb[0].mxu0
  %v734 = vadd.f32 %v639, %v733
  %v735 = vpop.f32.mrb[0].mxu0
  %736 = vmatprep.mubr.bf16.mxu0 0
  %737 = vmatmul.mubr.bf16.gmra.mrb[0].mxu0 %v605
  %v738 = vpop.f32.mrb[0].mxu0
  %v739 = vadd.f32 %v639, %v738
  %v740 = vpop.f32.mrb[0].mxu0
  %v741 = vpop.f32.mrb[0].mxu0
  %v742 = vadd.f32 %v639, %v741
  %v743 = vpop.f32.mrb[0].mxu0
  %744 = vmatprep.mubr.bf16.mxu0 0
  %745 = vmatmul.mubr.bf16.gmra.mrb[0].mxu0 %v606
  %v746 = vpop.f32.mrb[0].mxu0
  %v747 = vadd.f32 %v639, %v746
  %v748 = vpop.f32.mrb[0].mxu0
  %v749 = vpop.f32.mrb[0].mxu0
  %v750 = vadd.f32 %v639, %v749
  %v751 = vpop.f32.mrb[0].mxu0
  %752 = vmatprep.mubr.bf16.mxu0 0
  %753 = vmatmul.mubr.bf16.gmra.mrb[0].mxu0 %v607
  %v754 = vpop.f32.mrb[0].mxu0
  %v755 = vadd.f32 %v639, %v754
  %v756 = vpop.f32.mrb[0].mxu0
  %v757 = vpop.f32.mrb[0].mxu0
  %v758 = vadd.f32 %v639, %v757
  %v759 = vpop.f32.mrb[0].mxu0
  %760 = vmatprep.mubr.bf16.mxu0 0
  %761 = vmatmul.mubr.bf16.gmra.mrb[0].mxu0 %v608
  %v762 = vpop.f32.mrb[0].mxu0
  %v763 = vadd.f32 %v639, %v762
  %v764 = vpop.f32.mrb[0].mxu0
  %v765 = vpop.f32.mrb[0].mxu0
  %v766 = vadd.f32 %v639, %v765
  %v767 = vpop.f32.mrb[0].mxu0
  %768 = vmatprep.mubr.bf16.mxu0 0
  %769 = vmatmul.mubr.bf16.gmra.mrb[0].mxu0 %v609
  %v770 = vpop.f32.mrb[0].mxu0
  %v771 = vadd.f32 %v639, %v770
  %v772 = vpop.f32.mrb[0].mxu0
  %v773 = vpop.f32.mrb[0].mxu0
  %v774 = vadd.f32 %v639, %v773
  %v775 = vpop.f32.mrb[0].mxu0
  %776 = vmatprep.mubr.bf16.mxu0 0
  %777 = vmatmul.mubr.bf16.gmra.mrb[0].mxu0 %v610
  %v778 = vpop.f32.mrb[0].mxu0
  %v779 = vadd.f32 %v639, %v778
  %v780 = vpop.f32.mrb[0].mxu0
  %v781 = vpop.f32.mrb[0].mxu0
  %v782 = vadd.f32 %v639, %v781
  %v783 = vpop.f32.mrb[0].mxu0
  %784 = vmatprep.mubr.bf16.mxu0 0
  %785 = vmatmul.mubr.bf16.gmra.mrb[0].mxu0 %v611
  %v786 = vpop.f32.mrb[0].mxu0
  %v787 = vadd.f32 %v639, %v786
  %v788 = vpop.f32.mrb[0].mxu0
  %v789 = vpop.f32.mrb[0].mxu0
  %v790 = vadd.f32 %v639, %v789
  %v791 = vpop.f32.mrb[0].mxu0
  %792 = vmatprep.mubr.bf16.mxu0 0
  %793 = vmatmul.mubr.bf16.gmra.mrb[0].mxu0 %v612
  %v794 = vpop.f32.mrb[0].mxu0
  %v795 = vadd.f32 %v639, %v794
  %v796 = vpop.f32.mrb[0].mxu0
  %v797 = vpop.f32.mrb[0].mxu0
  %v798 = vadd.f32 %v639, %v797
  %v799 = vpop.f32.mrb[0].mxu0
  %800 = vmatprep.mubr.bf16.mxu0 0
  %801 = vmatmul.mubr.bf16.gmra.mrb[0].mxu0 %v613
  %v802 = vpop.f32.mrb[0].mxu0
  %v803 = vadd.f32 %v639, %v802
  %v804 = vpop.f32.mrb[0].mxu0
  %v805 = vpop.f32.mrb[0].mxu0
  %v806 = vadd.f32 %v639, %v805
  %v807 = vpop.f32.mrb[0].mxu0
  %808 = vmatprep.mubr.bf16.mxu0 0
  %809 = vmatmul.mubr.bf16.gmra.mrb[0].mxu0 %v614
  %v810 = vpop.f32.mrb[0].mxu0
  %v811 = vadd.f32 %v639, %v810
  %v812 = vpop.f32.mrb[0].mxu0
  %v813 = vpop.f32.mrb[0].mxu0
  %v814 = vadd.f32 %v639, %v813
  %v815 = vpop.f32.mrb[0].mxu0
  %816 = vmatprep.mubr.bf16.mxu0 0
  %817 = vmatmul.mubr.bf16.gmra.mrb[0].mxu0 %v615
  %v818 = vpop.f32.mrb[0].mxu0
  %v819 = vadd.f32 %v639, %v818
  %v820 = vpop.f32.mrb[0].mxu0
  %v821 = vpop.f32.mrb[0].mxu0
  %v822 = vadd.f32 %v639, %v821
  %v823 = vpop.f32.mrb[0].mxu0
  %824 = vmatprep.mubr.bf16.mxu0 0
  %825 = vmatmul.mubr.bf16.gmra.mrb[0].mxu0 %v616
  %v826 = vpop.f32.mrb[0].mxu0
  %v827 = vadd.f32 %v639, %v826
  %v828 = vpop.f32.mrb[0].mxu0
  %v829 = vpop.f32.mrb[0].mxu0
  %v830 = vadd.f32 %v639, %v829
  %v831 = vpop.f32.mrb[0].mxu0
  %832 = vmatprep.mubr.bf16.mxu0 0
  %833 = vmatmul.mubr.bf16.gmra.mrb[0].mxu0 %v617
  %v834 = vpop.f32.mrb[0].mxu0
  %v835 = vadd.f32 %v639, %v834
  %v836 = vpop.f32.mrb[0].mxu0
  %v837 = vpop.f32.mrb[0].mxu0
  %v838 = vadd.f32 %v639, %v837
  %v839 = vpop.f32.mrb[0].mxu0
  %840 = vmatprep.mubr.bf16.mxu0 0
  %841 = vmatmul.mubr.bf16.gmra.mrb[0].mxu0 %v618
  %v842 = vpop.f32.mrb[0].mxu0
  %v843 = vadd.f32 %v639, %v842
  %v844 = vpop.f32.mrb[0].mxu0
  %v845 = vpop.f32.mrb[0].mxu0
  %v846 = vadd.f32 %v639, %v845
  %v847 = vpop.f32.mrb[0].mxu0
  %848 = vdwg.mxu0
  %v849 = vmax.f32 %v723, 0.0
  %v850 = vmax.f32 %v726, 0.0
  %v851 = vmax.f32 %v731, 0.0
  %v852 = vmax.f32 %v734, 0.0
  %v853 = vmax.f32 %v739, 0.0
  %v854 = vmax.f32 %v742, 0.0
  %v855 = vmax.f32 %v747, 0.0
  %v856 = vmax.f32 %v750, 0.0
  %v857 = vmax.f32 %v755, 0.0
  %v858 = vmax.f32 %v758, 0.0
  %v859 = vmax.f32 %v763, 0.0
  %v860 = vmax.f32 %v766, 0.0
  %v861 = vmax.f32 %v771, 0.0
  %v862 = vmax.f32 %v774, 0.0
  %v863 = vmax.f32 %v779, 0.0
  %v864 = vmax.f32 %v782, 0.0
  %v865 = vmax.f32 %v787, 0.0
  %v866 = vmax.f32 %v790, 0.0
  %v867 = vmax.f32 %v795, 0.0
  %v868 = vmax.f32 %v798, 0.0
  %v869 = vmax.f32 %v803, 0.0
  %v870 = vmax.f32 %v806, 0.0
  %v871 = vmax.f32 %v811, 0.0
  %v872 = vmax.f32 %v814, 0.0
  %v873 = vmax.f32 %v819, 0.0
  %v874 = vmax.f32 %v822, 0.0
  %v875 = vmax.f32 %v827, 0.0
  %v876 = vmax.f32 %v830, 0.0
  %v877 = vmax.f32 %v835, 0.0
  %v878 = vmax.f32 %v838, 0.0
  %v879 = vmax.f32 %v843, 0.0
  %v880 = vmax.f32 %v846, 0.0
  %v881 = vpack.c.bf16 %v850, %v849
  %v882 = vpack.c.bf16 %v852, %v851
  %v883 = vpack.c.bf16 %v854, %v853
  %v884 = vpack.c.bf16 %v856, %v855
  %v885 = vpack.c.bf16 %v858, %v857
  %v886 = vpack.c.bf16 %v860, %v859
  %v887 = vpack.c.bf16 %v862, %v861
  %v888 = vpack.c.bf16 %v864, %v863
  %v889 = vpack.c.bf16 %v866, %v865
  %v890 = vpack.c.bf16 %v868, %v867
  %v891 = vpack.c.bf16 %v870, %v869
  %v892 = vpack.c.bf16 %v872, %v871
  %v893 = vpack.c.bf16 %v874, %v873
  %v894 = vpack.c.bf16 %v876, %v875
  %v895 = vpack.c.bf16 %v878, %v877
  %v896 = vpack.c.bf16 %v880, %v879
  %s897 = scalar_lea.vmem %s1, 192
  %v898 = vld [vmem:[%s897] sm:$0xf]
  %v899 = vld [vmem:[%s897 + $0x4] sm:$0xf]
  %v900 = vld [vmem:[%s897 + $0x8] sm:$0xf]
  %v901 = vld [vmem:[%s897 + $0xc] sm:$0xf]
  %v902 = vld [vmem:[%s897 + $0x10] sm:$0xf]
  %v903 = vld [vmem:[%s897 + $0x14] sm:$0xf]
  %v904 = vld [vmem:[%s897 + $0x18] sm:$0xf]
  %v905 = vld [vmem:[%s897 + $0x1c] sm:$0xf]
  %v906 = vld [vmem:[%s897 + $0x20] sm:$0xf]
  %v907 = vld [vmem:[%s897 + $0x24] sm:$0xf]
  %v908 = vld [vmem:[%s897 + $0x28] sm:$0xf]
  %v909 = vld [vmem:[%s897 + $0x2c] sm:$0xf]
  %v910 = vld [vmem:[%s897 + $0x30] sm:$0xf]
  %v911 = vld [vmem:[%s897 + $0x34] sm:$0xf]
  %v912 = vld [vmem:[%s897 + $0x38] sm:$0xf]
  %v913 = vld [vmem:[%s897 + $0x3c] sm:$0xf]
  %v914 = vlaneseq
  %v915 = vshrl.u32 %v914, 7
  %v916 = vsub.s32 3, %v915
  %v917 = vrot.slane %v47, %v916
  %v934 = vunpack.c.l.b16 %v898
  %v935 = vunpack.c.l.b16 %v899
  %v936 = vunpack.c.l.b16 %v900
  %v937 = vunpack.c.l.b16 %v901
  %v938 = vunpack.c.l.b16 %v902
  %v939 = vunpack.c.l.b16 %v903
  %v940 = vunpack.c.l.b16 %v904
  %v941 = vunpack.c.l.b16 %v905
  %v942 = vunpack.c.l.b16 %v906
  %v943 = vunpack.c.l.b16 %v907
  %v944 = vunpack.c.l.b16 %v908
  %v945 = vunpack.c.l.b16 %v909
  %v946 = vunpack.c.l.b16 %v910
  %v947 = vunpack.c.l.b16 %v911
  %v948 = vunpack.c.l.b16 %v912
  %v949 = vunpack.c.l.b16 %v913
  %v950 = vpack.c.b16 %v935, %v934
  %v951 = vpack.c.b16 %v937, %v936
  %v952 = vpack.c.b16 %v939, %v938
  %v953 = vpack.c.b16 %v941, %v940
  %v954 = vpack.c.b16 %v943, %v942
  %v955 = vpack.c.b16 %v945, %v944
  %v956 = vpack.c.b16 %v947, %v946
  %v957 = vpack.c.b16 %v949, %v948
  %966 = vmatprep.subr.bf16.mxu0 0
  %967 = vmatpush1.bf16.msra.mxu0 %v950
  %968 = vmatprep.subr.bf16.mxu0 0
  %969 = vmatpush1.bf16.msra.mxu0 %v951
  %970 = vmatprep.subr.bf16.mxu0 0
  %971 = vmatpush1.bf16.msra.mxu0 %v952
  %972 = vmatprep.subr.bf16.mxu0 0
  %973 = vmatpush1.bf16.msra.mxu0 %v953
  %974 = vmatprep.subr.bf16.mxu0 0
  %975 = vmatpush1.bf16.msra.mxu0 %v954
  %976 = vmatprep.subr.bf16.mxu0 0
  %977 = vmatpush1.bf16.msra.mxu0 %v955
  %978 = vmatprep.subr.bf16.mxu0 0
  %979 = vmatpush1.bf16.msra.mxu0 %v956
  %980 = vmatprep.subr.bf16.mxu0 0
  %981 = vmatpush1.bf16.msra.mxu0 %v957
  %982 = vmatprep.subr.bf16.mxu0 0
  %983 = vmatpush1.bf16.msra.mxu0 0
  %984 = vmatprep.subr.bf16.mxu0 0
  %985 = vmatpush1.bf16.msra.mxu0 0
  %986 = vmatprep.subr.bf16.mxu0 0
  %987 = vmatpush1.bf16.msra.mxu0 0
  %988 = vmatprep.subr.bf16.mxu0 0
  %989 = vmatpush1.bf16.msra.mxu0 0
  %990 = vmatprep.subr.bf16.mxu0 0
  %991 = vmatpush1.bf16.msra.mxu0 0
  %992 = vmatprep.subr.bf16.mxu0 0
  %993 = vmatpush1.bf16.msra.mxu0 0
  %994 = vmatprep.subr.bf16.mxu0 0
  %995 = vmatpush1.bf16.msra.mxu0 0
  %996 = vmatprep.subr.bf16.mxu0 0
  %997 = vmatpush1.bf16.msra.mxu0 0
  %998 = vmatprep.mubr.bf16.mxu0 0
  %999 = vmatmul.mubr.bf16.gmra.mrb[0].mxu0 %v881
  %v1000 = vpop.f32.mrb[0].mxu0
  %v1001 = vadd.f32 %v917, %v1000
  %v1002 = vpop.f32.mrb[0].mxu0
  %v1003 = vpop.f32.mrb[0].mxu0
  %v1004 = vadd.f32 %v917, %v1003
  %v1005 = vpop.f32.mrb[0].mxu0
  %1006 = vmatprep.mubr.bf16.mxu0 0
  %1007 = vmatmul.mubr.bf16.gmra.mrb[0].mxu0 %v882
  %v1008 = vpop.f32.mrb[0].mxu0
  %v1009 = vadd.f32 %v917, %v1008
  %v1010 = vpop.f32.mrb[0].mxu0
  %v1011 = vpop.f32.mrb[0].mxu0
  %v1012 = vadd.f32 %v917, %v1011
  %v1013 = vpop.f32.mrb[0].mxu0
  %1014 = vmatprep.mubr.bf16.mxu0 0
  %1015 = vmatmul.mubr.bf16.gmra.mrb[0].mxu0 %v883
  %v1016 = vpop.f32.mrb[0].mxu0
  %v1017 = vadd.f32 %v917, %v1016
  %v1018 = vpop.f32.mrb[0].mxu0
  %v1019 = vpop.f32.mrb[0].mxu0
  %v1020 = vadd.f32 %v917, %v1019
  %v1021 = vpop.f32.mrb[0].mxu0
  %1022 = vmatprep.mubr.bf16.mxu0 0
  %1023 = vmatmul.mubr.bf16.gmra.mrb[0].mxu0 %v884
  %v1024 = vpop.f32.mrb[0].mxu0
  %v1025 = vadd.f32 %v917, %v1024
  %v1026 = vpop.f32.mrb[0].mxu0
  %v1027 = vpop.f32.mrb[0].mxu0
  %v1028 = vadd.f32 %v917, %v1027
  %v1029 = vpop.f32.mrb[0].mxu0
  %1030 = vmatprep.mubr.bf16.mxu0 0
  %1031 = vmatmul.mubr.bf16.gmra.mrb[0].mxu0 %v885
  %v1032 = vpop.f32.mrb[0].mxu0
  %v1033 = vadd.f32 %v917, %v1032
  %v1034 = vpop.f32.mrb[0].mxu0
  %v1035 = vpop.f32.mrb[0].mxu0
  %v1036 = vadd.f32 %v917, %v1035
  %v1037 = vpop.f32.mrb[0].mxu0
  %1038 = vmatprep.mubr.bf16.mxu0 0
  %1039 = vmatmul.mubr.bf16.gmra.mrb[0].mxu0 %v886
  %v1040 = vpop.f32.mrb[0].mxu0
  %v1041 = vadd.f32 %v917, %v1040
  %v1042 = vpop.f32.mrb[0].mxu0
  %v1043 = vpop.f32.mrb[0].mxu0
  %v1044 = vadd.f32 %v917, %v1043
  %v1045 = vpop.f32.mrb[0].mxu0
  %1046 = vmatprep.mubr.bf16.mxu0 0
  %1047 = vmatmul.mubr.bf16.gmra.mrb[0].mxu0 %v887
  %v1048 = vpop.f32.mrb[0].mxu0
  %v1049 = vadd.f32 %v917, %v1048
  %v1050 = vpop.f32.mrb[0].mxu0
  %v1051 = vpop.f32.mrb[0].mxu0
  %v1052 = vadd.f32 %v917, %v1051
  %v1053 = vpop.f32.mrb[0].mxu0
  %1054 = vmatprep.mubr.bf16.mxu0 0
  %1055 = vmatmul.mubr.bf16.gmra.mrb[0].mxu0 %v888
  %v1056 = vpop.f32.mrb[0].mxu0
  %v1057 = vadd.f32 %v917, %v1056
  %v1058 = vpop.f32.mrb[0].mxu0
  %v1059 = vpop.f32.mrb[0].mxu0
  %v1060 = vadd.f32 %v917, %v1059
  %v1061 = vpop.f32.mrb[0].mxu0
  %1062 = vmatprep.mubr.bf16.mxu0 0
  %1063 = vmatmul.mubr.bf16.gmra.mrb[0].mxu0 %v889
  %v1064 = vpop.f32.mrb[0].mxu0
  %v1065 = vadd.f32 %v917, %v1064
  %v1066 = vpop.f32.mrb[0].mxu0
  %v1067 = vpop.f32.mrb[0].mxu0
  %v1068 = vadd.f32 %v917, %v1067
  %v1069 = vpop.f32.mrb[0].mxu0
  %1070 = vmatprep.mubr.bf16.mxu0 0
  %1071 = vmatmul.mubr.bf16.gmra.mrb[0].mxu0 %v890
  %v1072 = vpop.f32.mrb[0].mxu0
  %v1073 = vadd.f32 %v917, %v1072
  %v1074 = vpop.f32.mrb[0].mxu0
  %v1075 = vpop.f32.mrb[0].mxu0
  %v1076 = vadd.f32 %v917, %v1075
  %v1077 = vpop.f32.mrb[0].mxu0
  %1078 = vmatprep.mubr.bf16.mxu0 0
  %1079 = vmatmul.mubr.bf16.gmra.mrb[0].mxu0 %v891
  %v1080 = vpop.f32.mrb[0].mxu0
  %v1081 = vadd.f32 %v917, %v1080
  %v1082 = vpop.f32.mrb[0].mxu0
  %v1083 = vpop.f32.mrb[0].mxu0
  %v1084 = vadd.f32 %v917, %v1083
  %v1085 = vpop.f32.mrb[0].mxu0
  %1086 = vmatprep.mubr.bf16.mxu0 0
  %1087 = vmatmul.mubr.bf16.gmra.mrb[0].mxu0 %v892
  %v1088 = vpop.f32.mrb[0].mxu0
  %v1089 = vadd.f32 %v917, %v1088
  %v1090 = vpop.f32.mrb[0].mxu0
  %v1091 = vpop.f32.mrb[0].mxu0
  %v1092 = vadd.f32 %v917, %v1091
  %v1093 = vpop.f32.mrb[0].mxu0
  %1094 = vmatprep.mubr.bf16.mxu0 0
  %1095 = vmatmul.mubr.bf16.gmra.mrb[0].mxu0 %v893
  %v1096 = vpop.f32.mrb[0].mxu0
  %v1097 = vadd.f32 %v917, %v1096
  %v1098 = vpop.f32.mrb[0].mxu0
  %v1099 = vpop.f32.mrb[0].mxu0
  %v1100 = vadd.f32 %v917, %v1099
  %v1101 = vpop.f32.mrb[0].mxu0
  %1102 = vmatprep.mubr.bf16.mxu0 0
  %1103 = vmatmul.mubr.bf16.gmra.mrb[0].mxu0 %v894
  %v1104 = vpop.f32.mrb[0].mxu0
  %v1105 = vadd.f32 %v917, %v1104
  %v1106 = vpop.f32.mrb[0].mxu0
  %v1107 = vpop.f32.mrb[0].mxu0
  %v1108 = vadd.f32 %v917, %v1107
  %v1109 = vpop.f32.mrb[0].mxu0
  %1110 = vmatprep.mubr.bf16.mxu0 0
  %1111 = vmatmul.mubr.bf16.gmra.mrb[0].mxu0 %v895
  %v1112 = vpop.f32.mrb[0].mxu0
  %v1113 = vadd.f32 %v917, %v1112
  %v1114 = vpop.f32.mrb[0].mxu0
  %v1115 = vpop.f32.mrb[0].mxu0
  %v1116 = vadd.f32 %v917, %v1115
  %v1117 = vpop.f32.mrb[0].mxu0
  %1118 = vmatprep.mubr.bf16.mxu0 0
  %1119 = vmatmul.mubr.bf16.gmra.mrb[0].mxu0 %v896
  %v1120 = vpop.f32.mrb[0].mxu0
  %v1121 = vadd.f32 %v917, %v1120
  %v1122 = vpop.f32.mrb[0].mxu0
  %v1123 = vpop.f32.mrb[0].mxu0
  %v1124 = vadd.f32 %v917, %v1123
  %v1125 = vpop.f32.mrb[0].mxu0
  %1126 = vdwg.mxu0
  %v1127 = vmul.f32 %v1001, 0.5
  %v1128 = vmul.f32 %v1004, 0.5
  %v1129 = vmul.f32 %v1009, 0.5
  %v1130 = vmul.f32 %v1012, 0.5
  %v1131 = vmul.f32 %v1017, 0.5
  %v1132 = vmul.f32 %v1020, 0.5
  %v1133 = vmul.f32 %v1025, 0.5
  %v1134 = vmul.f32 %v1028, 0.5
  %v1135 = vmul.f32 %v1033, 0.5
  %v1136 = vmul.f32 %v1036, 0.5
  %v1137 = vmul.f32 %v1041, 0.5
  %v1138 = vmul.f32 %v1044, 0.5
  %v1139 = vmul.f32 %v1049, 0.5
  %v1140 = vmul.f32 %v1052, 0.5
  %v1141 = vmul.f32 %v1057, 0.5
  %v1142 = vmul.f32 %v1060, 0.5
  %v1143 = vmul.f32 %v1065, 0.5
  %v1144 = vmul.f32 %v1068, 0.5
  %v1145 = vmul.f32 %v1073, 0.5
  %v1146 = vmul.f32 %v1076, 0.5
  %v1147 = vmul.f32 %v1081, 0.5
  %v1148 = vmul.f32 %v1084, 0.5
  %v1149 = vmul.f32 %v1089, 0.5
  %v1150 = vmul.f32 %v1092, 0.5
  %v1151 = vmul.f32 %v1097, 0.5
  %v1152 = vmul.f32 %v1100, 0.5
  %v1153 = vmul.f32 %v1105, 0.5
  %v1154 = vmul.f32 %v1108, 0.5
  %v1155 = vmul.f32 %v1113, 0.5
  %v1156 = vmul.f32 %v1116, 0.5
  %v1157 = vmul.f32 %v1121, 0.5
  %v1158 = vmul.f32 %v1124, 0.5
  %v1159 = vmul.f32 %v1127, 1.442695
  %v1160 = vpow.pop %v1159
  %v1161 = vmul.f32 %v1128, 1.442695
  %v1162 = vpow.pop %v1161
  %v1163 = vmul.f32 %v1129, 1.442695
  %v1164 = vpow.pop %v1163
  %v1165 = vmul.f32 %v1130, 1.442695
  %v1166 = vpow.pop %v1165
  %v1167 = vmul.f32 %v1131, 1.442695
  %v1168 = vpow.pop %v1167
  %v1169 = vmul.f32 %v1132, 1.442695
  %v1170 = vpow.pop %v1169
  %v1171 = vmul.f32 %v1133, 1.442695
  %v1172 = vpow.pop %v1171
  %v1173 = vmul.f32 %v1134, 1.442695
  %v1174 = vpow.pop %v1173
  %v1175 = vmul.f32 %v1135, 1.442695
  %v1176 = vpow.pop %v1175
  %v1177 = vmul.f32 %v1136, 1.442695
  %v1178 = vpow.pop %v1177
  %v1179 = vmul.f32 %v1137, 1.442695
  %v1180 = vpow.pop %v1179
  %v1181 = vmul.f32 %v1138, 1.442695
  %v1182 = vpow.pop %v1181
  %v1183 = vmul.f32 %v1139, 1.442695
  %v1184 = vpow.pop %v1183
  %v1185 = vmul.f32 %v1140, 1.442695
  %v1186 = vpow.pop %v1185
  %v1187 = vmul.f32 %v1141, 1.442695
  %v1188 = vpow.pop %v1187
  %v1189 = vmul.f32 %v1142, 1.442695
  %v1190 = vpow.pop %v1189
  %v1191 = vmul.f32 %v1143, 1.442695
  %v1192 = vpow.pop %v1191
  %v1193 = vmul.f32 %v1144, 1.442695
  %v1194 = vpow.pop %v1193
  %v1195 = vmul.f32 %v1145, 1.442695
  %v1196 = vpow.pop %v1195
  %v1197 = vmul.f32 %v1146, 1.442695
  %v1198 = vpow.pop %v1197
  %v1199 = vmul.f32 %v1147, 1.442695
  %v1200 = vpow.pop %v1199
  %v1201 = vmul.f32 %v1148, 1.442695
  %v1202 = vpow.pop %v1201
  %v1203 = vmul.f32 %v1149, 1.442695
  %v1204 = vpow.pop %v1203
  %v1205 = vmul.f32 %v1150, 1.442695
  %v1206 = vpow.pop %v1205
  %v1207 = vmul.f32 %v1151, 1.442695
  %v1208 = vpow.pop %v1207
  %v1209 = vmul.f32 %v1152, 1.442695
  %v1210 = vpow.pop %v1209
  %v1211 = vmul.f32 %v1153, 1.442695
  %v1212 = vpow.pop %v1211
  %v1213 = vmul.f32 %v1154, 1.442695
  %v1214 = vpow.pop %v1213
  %v1215 = vmul.f32 %v1155, 1.442695
  %v1216 = vpow.pop %v1215
  %v1217 = vmul.f32 %v1156, 1.442695
  %v1218 = vpow.pop %v1217
  %v1219 = vmul.f32 %v1157, 1.442695
  %v1220 = vpow.pop %v1219
  %v1221 = vmul.f32 %v1158, 1.442695
  %v1222 = vpow.pop %v1221
  %1255 = vrot.lane.b32.xlu0 %v15, 80
  %v1256 = vpop.permute.xlu0 %1255
  %1257 = vrot.lane.b32.xlu0 %v16, 80
  %v1258 = vpop.permute.xlu0 %1257
  %1259 = vrot.lane.b32.xlu0 %v17, 80
  %v1260 = vpop.permute.xlu0 %1259
  %1261 = vrot.lane.b32.xlu0 %v18, 80
  %v1262 = vpop.permute.xlu0 %1261
  %1263 = vrot.lane.b32.xlu0 %v19, 80
  %v1264 = vpop.permute.xlu0 %1263
  %1265 = vrot.lane.b32.xlu0 %v20, 80
  %v1266 = vpop.permute.xlu0 %1265
  %1267 = vrot.lane.b32.xlu0 %v21, 80
  %v1268 = vpop.permute.xlu0 %1267
  %1269 = vrot.lane.b32.xlu0 %v22, 80
  %v1270 = vpop.permute.xlu0 %1269
  %1271 = vrot.lane.b32.xlu0 %v23, 80
  %v1272 = vpop.permute.xlu0 %1271
  %1273 = vrot.lane.b32.xlu0 %v24, 80
  %v1274 = vpop.permute.xlu0 %1273
  %1275 = vrot.lane.b32.xlu0 %v25, 80
  %v1276 = vpop.permute.xlu0 %1275
  %1277 = vrot.lane.b32.xlu0 %v26, 80
  %v1278 = vpop.permute.xlu0 %1277
  %1279 = vrot.lane.b32.xlu0 %v27, 80
  %v1280 = vpop.permute.xlu0 %1279
  %1281 = vrot.lane.b32.xlu0 %v28, 80
  %v1282 = vpop.permute.xlu0 %1281
  %1283 = vrot.lane.b32.xlu0 %v29, 80
  %v1284 = vpop.permute.xlu0 %1283
  %1285 = vrot.lane.b32.xlu0 %v30, 80
  %v1286 = vpop.permute.xlu0 %1285
  %1287 = vrot.lane.b32.xlu0 %v31, 80
  %v1288 = vpop.permute.xlu0 %1287
  %1289 = vrot.lane.b32.xlu0 %v32, 80
  %v1290 = vpop.permute.xlu0 %1289
  %1291 = vrot.lane.b32.xlu0 %v33, 80
  %v1292 = vpop.permute.xlu0 %1291
  %1293 = vrot.lane.b32.xlu0 %v34, 80
  %v1294 = vpop.permute.xlu0 %1293
  %1295 = vrot.lane.b32.xlu0 %v35, 80
  %v1296 = vpop.permute.xlu0 %1295
  %1297 = vrot.lane.b32.xlu0 %v36, 80
  %v1298 = vpop.permute.xlu0 %1297
  %1299 = vrot.lane.b32.xlu0 %v37, 80
  %v1300 = vpop.permute.xlu0 %1299
  %1301 = vrot.lane.b32.xlu0 %v38, 80
  %v1302 = vpop.permute.xlu0 %1301
  %1303 = vrot.lane.b32.xlu0 %v39, 80
  %v1304 = vpop.permute.xlu0 %1303
  %1305 = vrot.lane.b32.xlu0 %v40, 80
  %v1306 = vpop.permute.xlu0 %1305
  %1307 = vrot.lane.b32.xlu0 %v41, 80
  %v1308 = vpop.permute.xlu0 %1307
  %1309 = vrot.lane.b32.xlu0 %v42, 80
  %v1310 = vpop.permute.xlu0 %1309
  %1311 = vrot.lane.b32.xlu0 %v43, 80
  %v1312 = vpop.permute.xlu0 %1311
  %1313 = vrot.lane.b32.xlu0 %v44, 80
  %v1314 = vpop.permute.xlu0 %1313
  %1315 = vrot.lane.b32.xlu0 %v45, 80
  %v1316 = vpop.permute.xlu0 %1315
  %1317 = vrot.lane.b32.xlu0 %v46, 80
  %v1318 = vpop.permute.xlu0 %1317
  %v1351 = vmul.f32 %v1160, %v1256
  %v1352 = vmul.f32 %v1162, %v1258
  %v1353 = vmul.f32 %v1164, %v1260
  %v1354 = vmul.f32 %v1166, %v1262
  %v1355 = vmul.f32 %v1168, %v1264
  %v1356 = vmul.f32 %v1170, %v1266
  %v1357 = vmul.f32 %v1172, %v1268
  %v1358 = vmul.f32 %v1174, %v1270
  %v1359 = vmul.f32 %v1176, %v1272
  %v1360 = vmul.f32 %v1178, %v1274
  %v1361 = vmul.f32 %v1180, %v1276
  %v1362 = vmul.f32 %v1182, %v1278
  %v1363 = vmul.f32 %v1184, %v1280
  %v1364 = vmul.f32 %v1186, %v1282
  %v1365 = vmul.f32 %v1188, %v1284
  %v1366 = vmul.f32 %v1190, %v1286
  %v1367 = vmul.f32 %v1192, %v1288
  %v1368 = vmul.f32 %v1194, %v1290
  %v1369 = vmul.f32 %v1196, %v1292
  %v1370 = vmul.f32 %v1198, %v1294
  %v1371 = vmul.f32 %v1200, %v1296
  %v1372 = vmul.f32 %v1202, %v1298
  %v1373 = vmul.f32 %v1204, %v1300
  %v1374 = vmul.f32 %v1206, %v1302
  %v1375 = vmul.f32 %v1208, %v1304
  %v1376 = vmul.f32 %v1210, %v1306
  %v1377 = vmul.f32 %v1212, %v1308
  %v1378 = vmul.f32 %v1214, %v1310
  %v1379 = vmul.f32 %v1216, %v1312
  %v1380 = vmul.f32 %v1218, %v1314
  %v1381 = vmul.f32 %v1220, %v1316
  %v1382 = vmul.f32 %v1222, %v1318
  %1415 = vrot.lane.b32.xlu0 %v1001, 16
  %v1416 = vpop.permute.xlu0 %1415
  %1417 = vrot.lane.b32.xlu0 %v1004, 16
  %v1418 = vpop.permute.xlu0 %1417
  %1419 = vrot.lane.b32.xlu0 %v1009, 16
  %v1420 = vpop.permute.xlu0 %1419
  %1421 = vrot.lane.b32.xlu0 %v1012, 16
  %v1422 = vpop.permute.xlu0 %1421
  %1423 = vrot.lane.b32.xlu0 %v1017, 16
  %v1424 = vpop.permute.xlu0 %1423
  %1425 = vrot.lane.b32.xlu0 %v1020, 16
  %v1426 = vpop.permute.xlu0 %1425
  %1427 = vrot.lane.b32.xlu0 %v1025, 16
  %v1428 = vpop.permute.xlu0 %1427
  %1429 = vrot.lane.b32.xlu0 %v1028, 16
  %v1430 = vpop.permute.xlu0 %1429
  %1431 = vrot.lane.b32.xlu0 %v1033, 16
  %v1432 = vpop.permute.xlu0 %1431
  %1433 = vrot.lane.b32.xlu0 %v1036, 16
  %v1434 = vpop.permute.xlu0 %1433
  %1435 = vrot.lane.b32.xlu0 %v1041, 16
  %v1436 = vpop.permute.xlu0 %1435
  %1437 = vrot.lane.b32.xlu0 %v1044, 16
  %v1438 = vpop.permute.xlu0 %1437
  %1439 = vrot.lane.b32.xlu0 %v1049, 16
  %v1440 = vpop.permute.xlu0 %1439
  %1441 = vrot.lane.b32.xlu0 %v1052, 16
  %v1442 = vpop.permute.xlu0 %1441
  %1443 = vrot.lane.b32.xlu0 %v1057, 16
  %v1444 = vpop.permute.xlu0 %1443
  %1445 = vrot.lane.b32.xlu0 %v1060, 16
  %v1446 = vpop.permute.xlu0 %1445
  %1447 = vrot.lane.b32.xlu0 %v1065, 16
  %v1448 = vpop.permute.xlu0 %1447
  %1449 = vrot.lane.b32.xlu0 %v1068, 16
  %v1450 = vpop.permute.xlu0 %1449
  %1451 = vrot.lane.b32.xlu0 %v1073, 16
  %v1452 = vpop.permute.xlu0 %1451
  %1453 = vrot.lane.b32.xlu0 %v1076, 16
  %v1454 = vpop.permute.xlu0 %1453
  %1455 = vrot.lane.b32.xlu0 %v1081, 16
  %v1456 = vpop.permute.xlu0 %1455
  %1457 = vrot.lane.b32.xlu0 %v1084, 16
  %v1458 = vpop.permute.xlu0 %1457
  %1459 = vrot.lane.b32.xlu0 %v1089, 16
  %v1460 = vpop.permute.xlu0 %1459
  %1461 = vrot.lane.b32.xlu0 %v1092, 16
  %v1462 = vpop.permute.xlu0 %1461
  %1463 = vrot.lane.b32.xlu0 %v1097, 16
  %v1464 = vpop.permute.xlu0 %1463
  %1465 = vrot.lane.b32.xlu0 %v1100, 16
  %v1466 = vpop.permute.xlu0 %1465
  %1467 = vrot.lane.b32.xlu0 %v1105, 16
  %v1468 = vpop.permute.xlu0 %1467
  %1469 = vrot.lane.b32.xlu0 %v1108, 16
  %v1470 = vpop.permute.xlu0 %1469
  %1471 = vrot.lane.b32.xlu0 %v1113, 16
  %v1472 = vpop.permute.xlu0 %1471
  %1473 = vrot.lane.b32.xlu0 %v1116, 16
  %v1474 = vpop.permute.xlu0 %1473
  %1475 = vrot.lane.b32.xlu0 %v1121, 16
  %v1476 = vpop.permute.xlu0 %1475
  %1477 = vrot.lane.b32.xlu0 %v1124, 16
  %v1478 = vpop.permute.xlu0 %1477
  %v1511 = vadd.f32 %v1351, %v1416
  %v1512 = vadd.f32 %v1352, %v1418
  %v1513 = vadd.f32 %v1353, %v1420
  %v1514 = vadd.f32 %v1354, %v1422
  %v1515 = vadd.f32 %v1355, %v1424
  %v1516 = vadd.f32 %v1356, %v1426
  %v1517 = vadd.f32 %v1357, %v1428
  %v1518 = vadd.f32 %v1358, %v1430
  %v1519 = vadd.f32 %v1359, %v1432
  %v1520 = vadd.f32 %v1360, %v1434
  %v1521 = vadd.f32 %v1361, %v1436
  %v1522 = vadd.f32 %v1362, %v1438
  %v1523 = vadd.f32 %v1363, %v1440
  %v1524 = vadd.f32 %v1364, %v1442
  %v1525 = vadd.f32 %v1365, %v1444
  %v1526 = vadd.f32 %v1366, %v1446
  %v1527 = vadd.f32 %v1367, %v1448
  %v1528 = vadd.f32 %v1368, %v1450
  %v1529 = vadd.f32 %v1369, %v1452
  %v1530 = vadd.f32 %v1370, %v1454
  %v1531 = vadd.f32 %v1371, %v1456
  %v1532 = vadd.f32 %v1372, %v1458
  %v1533 = vadd.f32 %v1373, %v1460
  %v1534 = vadd.f32 %v1374, %v1462
  %v1535 = vadd.f32 %v1375, %v1464
  %v1536 = vadd.f32 %v1376, %v1466
  %v1537 = vadd.f32 %v1377, %v1468
  %v1538 = vadd.f32 %v1378, %v1470
  %v1539 = vadd.f32 %v1379, %v1472
  %v1540 = vadd.f32 %v1380, %v1474
  %v1541 = vadd.f32 %v1381, %v1476
  %v1542 = vadd.f32 %v1382, %v1478
  %v1543 = vpack.c.bf16 %v1512, %v1511
  %v1544 = vpack.c.bf16 %v1514, %v1513
  %v1545 = vpack.c.bf16 %v1516, %v1515
  %v1546 = vpack.c.bf16 %v1518, %v1517
  %v1547 = vpack.c.bf16 %v1520, %v1519
  %v1548 = vpack.c.bf16 %v1522, %v1521
  %v1549 = vpack.c.bf16 %v1524, %v1523
  %v1550 = vpack.c.bf16 %v1526, %v1525
  %v1551 = vpack.c.bf16 %v1528, %v1527
  %v1552 = vpack.c.bf16 %v1530, %v1529
  %v1553 = vpack.c.bf16 %v1532, %v1531
  %v1554 = vpack.c.bf16 %v1534, %v1533
  %v1555 = vpack.c.bf16 %v1536, %v1535
  %v1556 = vpack.c.bf16 %v1538, %v1537
  %v1557 = vpack.c.bf16 %v1540, %v1539
  %v1558 = vpack.c.bf16 %v1542, %v1541
  %s1559 = scalar_lea.vmem %s1, 256
  %v1560 = vld [vmem:[%s1559] sm:$0xf]
  %v1561 = vld [vmem:[%s1559 + $0x4] sm:$0xf]
  %s1562 = scalar_lea.vmem %s1, 320
  %v1563 = vld [vmem:[%s1562] sm:$0xf]
  %v1564 = vld [vmem:[%s1562 + $0x4] sm:$0xf]
  %v1565 = vld [vmem:[%s1562 + $0x8] sm:$0xf]
  %v1566 = vld [vmem:[%s1562 + $0xc] sm:$0xf]
  %1583 = vrot.lane.b32.xlu0 %v48, 48
  %v1584 = vpop.permute.xlu0 %1583
  %1585 = vrot.lane.b32.xlu0 %v49, 48
  %v1586 = vpop.permute.xlu0 %1585
  %1587 = vrot.lane.b32.xlu0 %v50, 48
  %v1588 = vpop.permute.xlu0 %1587
  %1589 = vrot.lane.b32.xlu0 %v51, 48
  %v1590 = vpop.permute.xlu0 %1589
  %1591 = vrot.lane.b32.xlu0 %v52, 48
  %v1592 = vpop.permute.xlu0 %1591
  %1593 = vrot.lane.b32.xlu0 %v53, 48
  %v1594 = vpop.permute.xlu0 %1593
  %1595 = vrot.lane.b32.xlu0 %v54, 48
  %v1596 = vpop.permute.xlu0 %1595
  %1597 = vrot.lane.b32.xlu0 %v55, 48
  %v1598 = vpop.permute.xlu0 %1597
  %1599 = vrot.lane.b32.xlu0 %v56, 48
  %v1600 = vpop.permute.xlu0 %1599
  %1601 = vrot.lane.b32.xlu0 %v57, 48
  %v1602 = vpop.permute.xlu0 %1601
  %1603 = vrot.lane.b32.xlu0 %v58, 48
  %v1604 = vpop.permute.xlu0 %1603
  %1605 = vrot.lane.b32.xlu0 %v59, 48
  %v1606 = vpop.permute.xlu0 %1605
  %1607 = vrot.lane.b32.xlu0 %v60, 48
  %v1608 = vpop.permute.xlu0 %1607
  %1609 = vrot.lane.b32.xlu0 %v61, 48
  %v1610 = vpop.permute.xlu0 %1609
  %1611 = vrot.lane.b32.xlu0 %v62, 48
  %v1612 = vpop.permute.xlu0 %1611
  %1613 = vrot.lane.b32.xlu0 %v63, 48
  %v1614 = vpop.permute.xlu0 %1613
  %v1619 = vunpack.c.l.b16 %v1563
  %v1620 = vunpack.c.l.b16 %v1564
  %v1621 = vunpack.c.l.b16 %v1565
  %v1622 = vunpack.c.l.b16 %v1566
  %v1623 = vpack.c.b16 %v1620, %v1619
  %v1624 = vpack.c.b16 %v1622, %v1621
  %vm1627 = vcmask 261120
  %v1629 = vsel %vm1627, %v1584, 0
  %v1632 = vsel %vm1627, %v1586, 0
  %v1635 = vsel %vm1627, %v1588, 0
  %v1638 = vsel %vm1627, %v1590, 0
  %v1641 = vsel %vm1627, %v1592, 0
  %v1644 = vsel %vm1627, %v1594, 0
  %v1647 = vsel %vm1627, %v1596, 0
  %v1650 = vsel %vm1627, %v1598, 0
  %v1653 = vsel %vm1627, %v1600, 0
  %v1656 = vsel %vm1627, %v1602, 0
  %v1659 = vsel %vm1627, %v1604, 0
  %v1662 = vsel %vm1627, %v1606, 0
  %v1665 = vsel %vm1627, %v1608, 0
  %v1668 = vsel %vm1627, %v1610, 0
  %v1671 = vsel %vm1627, %v1612, 0
  %v1674 = vsel %vm1627, %v1614, 0
  %1676 = vmatprep.subr.bf16.mxu0 0
  %1677 = vmatpush1.bf16.msra.mxu0 %v1623
  %1678 = vmatprep.subr.bf16.mxu0 0
  %1679 = vmatpush1.bf16.msra.mxu0 %v1624
  %1680 = vmatprep.subr.bf16.mxu0 0
  %1681 = vmatpush1.bf16.msra.mxu0 0
  %1682 = vmatprep.subr.bf16.mxu0 0
  %1683 = vmatpush1.bf16.msra.mxu0 0
  %1684 = vmatprep.subr.bf16.mxu0 0
  %1685 = vmatpush1.bf16.msra.mxu0 0
  %1686 = vmatprep.subr.bf16.mxu0 0
  %1687 = vmatpush1.bf16.msra.mxu0 0
  %1688 = vmatprep.subr.bf16.mxu0 0
  %1689 = vmatpush1.bf16.msra.mxu0 0
  %1690 = vmatprep.subr.bf16.mxu0 0
  %1691 = vmatpush1.bf16.msra.mxu0 0
  %1692 = vmatprep.subr.bf16.mxu0 0
  %1693 = vmatpush1.bf16.msra.mxu0 0
  %1694 = vmatprep.subr.bf16.mxu0 0
  %1695 = vmatpush1.bf16.msra.mxu0 0
  %1696 = vmatprep.subr.bf16.mxu0 0
  %1697 = vmatpush1.bf16.msra.mxu0 0
  %1698 = vmatprep.subr.bf16.mxu0 0
  %1699 = vmatpush1.bf16.msra.mxu0 0
  %1700 = vmatprep.subr.bf16.mxu0 0
  %1701 = vmatpush1.bf16.msra.mxu0 0
  %1702 = vmatprep.subr.bf16.mxu0 0
  %1703 = vmatpush1.bf16.msra.mxu0 0
  %1704 = vmatprep.subr.bf16.mxu0 0
  %1705 = vmatpush1.bf16.msra.mxu0 0
  %1706 = vmatprep.subr.bf16.mxu0 0
  %1707 = vmatpush1.bf16.msra.mxu0 0
  %1708 = vmatprep.mubr.bf16.mxu0 0
  %1709 = vmatmul.mubr.bf16.gmra.mrb[0].mxu0 %v1629
  %v1710 = vpop.f32.mrb[0].mxu0
  %v1711 = vadd.f32 0.0, %v1710
  %v1712 = vpop.f32.mrb[0].mxu0
  %v1713 = vpop.f32.mrb[0].mxu0
  %v1714 = vadd.f32 0.0, %v1713
  %v1715 = vpop.f32.mrb[0].mxu0
  %1716 = vmatprep.mubr.bf16.mxu0 0
  %1717 = vmatmul.mubr.bf16.gmra.mrb[0].mxu0 %v1632
  %v1718 = vpop.f32.mrb[0].mxu0
  %v1719 = vadd.f32 0.0, %v1718
  %v1720 = vpop.f32.mrb[0].mxu0
  %v1721 = vpop.f32.mrb[0].mxu0
  %v1722 = vadd.f32 0.0, %v1721
  %v1723 = vpop.f32.mrb[0].mxu0
  %1724 = vmatprep.mubr.bf16.mxu0 0
  %1725 = vmatmul.mubr.bf16.gmra.mrb[0].mxu0 %v1635
  %v1726 = vpop.f32.mrb[0].mxu0
  %v1727 = vadd.f32 0.0, %v1726
  %v1728 = vpop.f32.mrb[0].mxu0
  %v1729 = vpop.f32.mrb[0].mxu0
  %v1730 = vadd.f32 0.0, %v1729
  %v1731 = vpop.f32.mrb[0].mxu0
  %1732 = vmatprep.mubr.bf16.mxu0 0
  %1733 = vmatmul.mubr.bf16.gmra.mrb[0].mxu0 %v1638
  %v1734 = vpop.f32.mrb[0].mxu0
  %v1735 = vadd.f32 0.0, %v1734
  %v1736 = vpop.f32.mrb[0].mxu0
  %v1737 = vpop.f32.mrb[0].mxu0
  %v1738 = vadd.f32 0.0, %v1737
  %v1739 = vpop.f32.mrb[0].mxu0
  %1740 = vmatprep.mubr.bf16.mxu0 0
  %1741 = vmatmul.mubr.bf16.gmra.mrb[0].mxu0 %v1641
  %v1742 = vpop.f32.mrb[0].mxu0
  %v1743 = vadd.f32 0.0, %v1742
  %v1744 = vpop.f32.mrb[0].mxu0
  %v1745 = vpop.f32.mrb[0].mxu0
  %v1746 = vadd.f32 0.0, %v1745
  %v1747 = vpop.f32.mrb[0].mxu0
  %1748 = vmatprep.mubr.bf16.mxu0 0
  %1749 = vmatmul.mubr.bf16.gmra.mrb[0].mxu0 %v1644
  %v1750 = vpop.f32.mrb[0].mxu0
  %v1751 = vadd.f32 0.0, %v1750
  %v1752 = vpop.f32.mrb[0].mxu0
  %v1753 = vpop.f32.mrb[0].mxu0
  %v1754 = vadd.f32 0.0, %v1753
  %v1755 = vpop.f32.mrb[0].mxu0
  %1756 = vmatprep.mubr.bf16.mxu0 0
  %1757 = vmatmul.mubr.bf16.gmra.mrb[0].mxu0 %v1647
  %v1758 = vpop.f32.mrb[0].mxu0
  %v1759 = vadd.f32 0.0, %v1758
  %v1760 = vpop.f32.mrb[0].mxu0
  %v1761 = vpop.f32.mrb[0].mxu0
  %v1762 = vadd.f32 0.0, %v1761
  %v1763 = vpop.f32.mrb[0].mxu0
  %1764 = vmatprep.mubr.bf16.mxu0 0
  %1765 = vmatmul.mubr.bf16.gmra.mrb[0].mxu0 %v1650
  %v1766 = vpop.f32.mrb[0].mxu0
  %v1767 = vadd.f32 0.0, %v1766
  %v1768 = vpop.f32.mrb[0].mxu0
  %v1769 = vpop.f32.mrb[0].mxu0
  %v1770 = vadd.f32 0.0, %v1769
  %v1771 = vpop.f32.mrb[0].mxu0
  %1772 = vmatprep.mubr.bf16.mxu0 0
  %1773 = vmatmul.mubr.bf16.gmra.mrb[0].mxu0 %v1653
  %v1774 = vpop.f32.mrb[0].mxu0
  %v1775 = vadd.f32 0.0, %v1774
  %v1776 = vpop.f32.mrb[0].mxu0
  %v1777 = vpop.f32.mrb[0].mxu0
  %v1778 = vadd.f32 0.0, %v1777
  %v1779 = vpop.f32.mrb[0].mxu0
  %1780 = vmatprep.mubr.bf16.mxu0 0
  %1781 = vmatmul.mubr.bf16.gmra.mrb[0].mxu0 %v1656
  %v1782 = vpop.f32.mrb[0].mxu0
  %v1783 = vadd.f32 0.0, %v1782
  %v1784 = vpop.f32.mrb[0].mxu0
  %v1785 = vpop.f32.mrb[0].mxu0
  %v1786 = vadd.f32 0.0, %v1785
  %v1787 = vpop.f32.mrb[0].mxu0
  %1788 = vmatprep.mubr.bf16.mxu0 0
  %1789 = vmatmul.mubr.bf16.gmra.mrb[0].mxu0 %v1659
  %v1790 = vpop.f32.mrb[0].mxu0
  %v1791 = vadd.f32 0.0, %v1790
  %v1792 = vpop.f32.mrb[0].mxu0
  %v1793 = vpop.f32.mrb[0].mxu0
  %v1794 = vadd.f32 0.0, %v1793
  %v1795 = vpop.f32.mrb[0].mxu0
  %1796 = vmatprep.mubr.bf16.mxu0 0
  %1797 = vmatmul.mubr.bf16.gmra.mrb[0].mxu0 %v1662
  %v1798 = vpop.f32.mrb[0].mxu0
  %v1799 = vadd.f32 0.0, %v1798
  %v1800 = vpop.f32.mrb[0].mxu0
  %v1801 = vpop.f32.mrb[0].mxu0
  %v1802 = vadd.f32 0.0, %v1801
  %v1803 = vpop.f32.mrb[0].mxu0
  %1804 = vmatprep.mubr.bf16.mxu0 0
  %1805 = vmatmul.mubr.bf16.gmra.mrb[0].mxu0 %v1665
  %v1806 = vpop.f32.mrb[0].mxu0
  %v1807 = vadd.f32 0.0, %v1806
  %v1808 = vpop.f32.mrb[0].mxu0
  %v1809 = vpop.f32.mrb[0].mxu0
  %v1810 = vadd.f32 0.0, %v1809
  %v1811 = vpop.f32.mrb[0].mxu0
  %1812 = vmatprep.mubr.bf16.mxu0 0
  %1813 = vmatmul.mubr.bf16.gmra.mrb[0].mxu0 %v1668
  %v1814 = vpop.f32.mrb[0].mxu0
  %v1815 = vadd.f32 0.0, %v1814
  %v1816 = vpop.f32.mrb[0].mxu0
  %v1817 = vpop.f32.mrb[0].mxu0
  %v1818 = vadd.f32 0.0, %v1817
  %v1819 = vpop.f32.mrb[0].mxu0
  %1820 = vmatprep.mubr.bf16.mxu0 0
  %1821 = vmatmul.mubr.bf16.gmra.mrb[0].mxu0 %v1671
  %v1822 = vpop.f32.mrb[0].mxu0
  %v1823 = vadd.f32 0.0, %v1822
  %v1824 = vpop.f32.mrb[0].mxu0
  %v1825 = vpop.f32.mrb[0].mxu0
  %v1826 = vadd.f32 0.0, %v1825
  %v1827 = vpop.f32.mrb[0].mxu0
  %1828 = vmatprep.mubr.bf16.mxu0 0
  %1829 = vmatmul.mubr.bf16.gmra.mrb[0].mxu0 %v1674
  %v1830 = vpop.f32.mrb[0].mxu0
  %v1831 = vadd.f32 0.0, %v1830
  %v1832 = vpop.f32.mrb[0].mxu0
  %v1833 = vpop.f32.mrb[0].mxu0
  %v1834 = vadd.f32 0.0, %v1833
  %v1835 = vpop.f32.mrb[0].mxu0
  %1836 = vdwg.mxu0
  %1853 = vrot.lane.b32.xlu0 %v1543, 112
  %v1854 = vpop.permute.xlu0 %1853
  %1855 = vrot.lane.b32.xlu0 %v1544, 112
  %v1856 = vpop.permute.xlu0 %1855
  %1857 = vrot.lane.b32.xlu0 %v1545, 112
  %v1858 = vpop.permute.xlu0 %1857
  %1859 = vrot.lane.b32.xlu0 %v1546, 112
  %v1860 = vpop.permute.xlu0 %1859
  %1861 = vrot.lane.b32.xlu0 %v1547, 112
  %v1862 = vpop.permute.xlu0 %1861
  %1863 = vrot.lane.b32.xlu0 %v1548, 112
  %v1864 = vpop.permute.xlu0 %1863
  %1865 = vrot.lane.b32.xlu0 %v1549, 112
  %v1866 = vpop.permute.xlu0 %1865
  %1867 = vrot.lane.b32.xlu0 %v1550, 112
  %v1868 = vpop.permute.xlu0 %1867
  %1869 = vrot.lane.b32.xlu0 %v1551, 112
  %v1870 = vpop.permute.xlu0 %1869
  %1871 = vrot.lane.b32.xlu0 %v1552, 112
  %v1872 = vpop.permute.xlu0 %1871
  %1873 = vrot.lane.b32.xlu0 %v1553, 112
  %v1874 = vpop.permute.xlu0 %1873
  %1875 = vrot.lane.b32.xlu0 %v1554, 112
  %v1876 = vpop.permute.xlu0 %1875
  %1877 = vrot.lane.b32.xlu0 %v1555, 112
  %v1878 = vpop.permute.xlu0 %1877
  %1879 = vrot.lane.b32.xlu0 %v1556, 112
  %v1880 = vpop.permute.xlu0 %1879
  %1881 = vrot.lane.b32.xlu0 %v1557, 112
  %v1882 = vpop.permute.xlu0 %1881
  %1883 = vrot.lane.b32.xlu0 %v1558, 112
  %v1884 = vpop.permute.xlu0 %1883
  %v1887 = vunpack.c.l.b16 %v1560
  %v1888 = vunpack.c.l.b16 %v1561
  %v1889 = vpack.c.b16 %v1888, %v1887
  %vm1891 = vcmask 130048
  %v1893 = vsel %vm1891, %v1854, 0
  %v1896 = vsel %vm1891, %v1856, 0
  %v1899 = vsel %vm1891, %v1858, 0
  %v1902 = vsel %vm1891, %v1860, 0
  %v1905 = vsel %vm1891, %v1862, 0
  %v1908 = vsel %vm1891, %v1864, 0
  %v1911 = vsel %vm1891, %v1866, 0
  %v1914 = vsel %vm1891, %v1868, 0
  %v1917 = vsel %vm1891, %v1870, 0
  %v1920 = vsel %vm1891, %v1872, 0
  %v1923 = vsel %vm1891, %v1874, 0
  %v1926 = vsel %vm1891, %v1876, 0
  %v1929 = vsel %vm1891, %v1878, 0
  %v1932 = vsel %vm1891, %v1880, 0
  %v1935 = vsel %vm1891, %v1882, 0
  %v1938 = vsel %vm1891, %v1884, 0
  %1940 = vmatprep.subr.bf16.mxu0 0
  %1941 = vmatpush1.bf16.msra.mxu0 %v1889
  %1942 = vmatprep.subr.bf16.mxu0 0
  %1943 = vmatpush1.bf16.msra.mxu0 0
  %1944 = vmatprep.subr.bf16.mxu0 0
  %1945 = vmatpush1.bf16.msra.mxu0 0
  %1946 = vmatprep.subr.bf16.mxu0 0
  %1947 = vmatpush1.bf16.msra.mxu0 0
  %1948 = vmatprep.subr.bf16.mxu0 0
  %1949 = vmatpush1.bf16.msra.mxu0 0
  %1950 = vmatprep.subr.bf16.mxu0 0
  %1951 = vmatpush1.bf16.msra.mxu0 0
  %1952 = vmatprep.subr.bf16.mxu0 0
  %1953 = vmatpush1.bf16.msra.mxu0 0
  %1954 = vmatprep.subr.bf16.mxu0 0
  %1955 = vmatpush1.bf16.msra.mxu0 0
  %1956 = vmatprep.subr.bf16.mxu0 0
  %1957 = vmatpush1.bf16.msra.mxu0 0
  %1958 = vmatprep.subr.bf16.mxu0 0
  %1959 = vmatpush1.bf16.msra.mxu0 0
  %1960 = vmatprep.subr.bf16.mxu0 0
  %1961 = vmatpush1.bf16.msra.mxu0 0
  %1962 = vmatprep.subr.bf16.mxu0 0
  %1963 = vmatpush1.bf16.msra.mxu0 0
  %1964 = vmatprep.subr.bf16.mxu0 0
  %1965 = vmatpush1.bf16.msra.mxu0 0
  %1966 = vmatprep.subr.bf16.mxu0 0
  %1967 = vmatpush1.bf16.msra.mxu0 0
  %1968 = vmatprep.subr.bf16.mxu0 0
  %1969 = vmatpush1.bf16.msra.mxu0 0
  %1970 = vmatprep.subr.bf16.mxu0 0
  %1971 = vmatpush1.bf16.msra.mxu0 0
  %1972 = vmatprep.mubr.bf16.mxu0 0
  %1973 = vmatmul.mubr.bf16.gmra.mrb[0].mxu0 %v1893
  %v1974 = vpop.f32.mrb[0].mxu0
  %v1975 = vadd.f32 %v1711, %v1974
  %v1976 = vpop.f32.mrb[0].mxu0
  %v1977 = vpop.f32.mrb[0].mxu0
  %v1978 = vadd.f32 %v1714, %v1977
  %v1979 = vpop.f32.mrb[0].mxu0
  %1980 = vmatprep.mubr.bf16.mxu0 0
  %1981 = vmatmul.mubr.bf16.gmra.mrb[0].mxu0 %v1896
  %v1982 = vpop.f32.mrb[0].mxu0
  %v1983 = vadd.f32 %v1719, %v1982
  %v1984 = vpop.f32.mrb[0].mxu0
  %v1985 = vpop.f32.mrb[0].mxu0
  %v1986 = vadd.f32 %v1722, %v1985
  %v1987 = vpop.f32.mrb[0].mxu0
  %1988 = vmatprep.mubr.bf16.mxu0 0
  %1989 = vmatmul.mubr.bf16.gmra.mrb[0].mxu0 %v1899
  %v1990 = vpop.f32.mrb[0].mxu0
  %v1991 = vadd.f32 %v1727, %v1990
  %v1992 = vpop.f32.mrb[0].mxu0
  %v1993 = vpop.f32.mrb[0].mxu0
  %v1994 = vadd.f32 %v1730, %v1993
  %v1995 = vpop.f32.mrb[0].mxu0
  %1996 = vmatprep.mubr.bf16.mxu0 0
  %1997 = vmatmul.mubr.bf16.gmra.mrb[0].mxu0 %v1902
  %v1998 = vpop.f32.mrb[0].mxu0
  %v1999 = vadd.f32 %v1735, %v1998
  %v2000 = vpop.f32.mrb[0].mxu0
  %v2001 = vpop.f32.mrb[0].mxu0
  %v2002 = vadd.f32 %v1738, %v2001
  %v2003 = vpop.f32.mrb[0].mxu0
  %2004 = vmatprep.mubr.bf16.mxu0 0
  %2005 = vmatmul.mubr.bf16.gmra.mrb[0].mxu0 %v1905
  %v2006 = vpop.f32.mrb[0].mxu0
  %v2007 = vadd.f32 %v1743, %v2006
  %v2008 = vpop.f32.mrb[0].mxu0
  %v2009 = vpop.f32.mrb[0].mxu0
  %v2010 = vadd.f32 %v1746, %v2009
  %v2011 = vpop.f32.mrb[0].mxu0
  %2012 = vmatprep.mubr.bf16.mxu0 0
  %2013 = vmatmul.mubr.bf16.gmra.mrb[0].mxu0 %v1908
  %v2014 = vpop.f32.mrb[0].mxu0
  %v2015 = vadd.f32 %v1751, %v2014
  %v2016 = vpop.f32.mrb[0].mxu0
  %v2017 = vpop.f32.mrb[0].mxu0
  %v2018 = vadd.f32 %v1754, %v2017
  %v2019 = vpop.f32.mrb[0].mxu0
  %2020 = vmatprep.mubr.bf16.mxu0 0
  %2021 = vmatmul.mubr.bf16.gmra.mrb[0].mxu0 %v1911
  %v2022 = vpop.f32.mrb[0].mxu0
  %v2023 = vadd.f32 %v1759, %v2022
  %v2024 = vpop.f32.mrb[0].mxu0
  %v2025 = vpop.f32.mrb[0].mxu0
  %v2026 = vadd.f32 %v1762, %v2025
  %v2027 = vpop.f32.mrb[0].mxu0
  %2028 = vmatprep.mubr.bf16.mxu0 0
  %2029 = vmatmul.mubr.bf16.gmra.mrb[0].mxu0 %v1914
  %v2030 = vpop.f32.mrb[0].mxu0
  %v2031 = vadd.f32 %v1767, %v2030
  %v2032 = vpop.f32.mrb[0].mxu0
  %v2033 = vpop.f32.mrb[0].mxu0
  %v2034 = vadd.f32 %v1770, %v2033
  %v2035 = vpop.f32.mrb[0].mxu0
  %2036 = vmatprep.mubr.bf16.mxu0 0
  %2037 = vmatmul.mubr.bf16.gmra.mrb[0].mxu0 %v1917
  %v2038 = vpop.f32.mrb[0].mxu0
  %v2039 = vadd.f32 %v1775, %v2038
  %v2040 = vpop.f32.mrb[0].mxu0
  %v2041 = vpop.f32.mrb[0].mxu0
  %v2042 = vadd.f32 %v1778, %v2041
  %v2043 = vpop.f32.mrb[0].mxu0
  %2044 = vmatprep.mubr.bf16.mxu0 0
  %2045 = vmatmul.mubr.bf16.gmra.mrb[0].mxu0 %v1920
  %v2046 = vpop.f32.mrb[0].mxu0
  %v2047 = vadd.f32 %v1783, %v2046
  %v2048 = vpop.f32.mrb[0].mxu0
  %v2049 = vpop.f32.mrb[0].mxu0
  %v2050 = vadd.f32 %v1786, %v2049
  %v2051 = vpop.f32.mrb[0].mxu0
  %2052 = vmatprep.mubr.bf16.mxu0 0
  %2053 = vmatmul.mubr.bf16.gmra.mrb[0].mxu0 %v1923
  %v2054 = vpop.f32.mrb[0].mxu0
  %v2055 = vadd.f32 %v1791, %v2054
  %v2056 = vpop.f32.mrb[0].mxu0
  %v2057 = vpop.f32.mrb[0].mxu0
  %v2058 = vadd.f32 %v1794, %v2057
  %v2059 = vpop.f32.mrb[0].mxu0
  %2060 = vmatprep.mubr.bf16.mxu0 0
  %2061 = vmatmul.mubr.bf16.gmra.mrb[0].mxu0 %v1926
  %v2062 = vpop.f32.mrb[0].mxu0
  %v2063 = vadd.f32 %v1799, %v2062
  %v2064 = vpop.f32.mrb[0].mxu0
  %v2065 = vpop.f32.mrb[0].mxu0
  %v2066 = vadd.f32 %v1802, %v2065
  %v2067 = vpop.f32.mrb[0].mxu0
  %2068 = vmatprep.mubr.bf16.mxu0 0
  %2069 = vmatmul.mubr.bf16.gmra.mrb[0].mxu0 %v1929
  %v2070 = vpop.f32.mrb[0].mxu0
  %v2071 = vadd.f32 %v1807, %v2070
  %v2072 = vpop.f32.mrb[0].mxu0
  %v2073 = vpop.f32.mrb[0].mxu0
  %v2074 = vadd.f32 %v1810, %v2073
  %v2075 = vpop.f32.mrb[0].mxu0
  %2076 = vmatprep.mubr.bf16.mxu0 0
  %2077 = vmatmul.mubr.bf16.gmra.mrb[0].mxu0 %v1932
  %v2078 = vpop.f32.mrb[0].mxu0
  %v2079 = vadd.f32 %v1815, %v2078
  %v2080 = vpop.f32.mrb[0].mxu0
  %v2081 = vpop.f32.mrb[0].mxu0
  %v2082 = vadd.f32 %v1818, %v2081
  %v2083 = vpop.f32.mrb[0].mxu0
  %2084 = vmatprep.mubr.bf16.mxu0 0
  %2085 = vmatmul.mubr.bf16.gmra.mrb[0].mxu0 %v1935
  %v2086 = vpop.f32.mrb[0].mxu0
  %v2087 = vadd.f32 %v1823, %v2086
  %v2088 = vpop.f32.mrb[0].mxu0
  %v2089 = vpop.f32.mrb[0].mxu0
  %v2090 = vadd.f32 %v1826, %v2089
  %v2091 = vpop.f32.mrb[0].mxu0
  %2092 = vmatprep.mubr.bf16.mxu0 0
  %2093 = vmatmul.mubr.bf16.gmra.mrb[0].mxu0 %v1938
  %v2094 = vpop.f32.mrb[0].mxu0
  %v2095 = vadd.f32 %v1831, %v2094
  %v2096 = vpop.f32.mrb[0].mxu0
  %v2097 = vpop.f32.mrb[0].mxu0
  %v2098 = vadd.f32 %v1834, %v2097
  %v2099 = vpop.f32.mrb[0].mxu0
  %2100 = vdwg.mxu0
  %v2101 = vlaneseq
  %v2102 = vshrl.u32 %v2101, 7
  %v2103 = vsub.s32 4, %v2102
  %v2104 = vrot.slane %v47, %v2103
  %v2105 = vadd.f32 %v1975, %v2104
  %v2106 = vadd.f32 %v1978, %v2104
  %v2107 = vadd.f32 %v1983, %v2104
  %v2108 = vadd.f32 %v1986, %v2104
  %v2109 = vadd.f32 %v1991, %v2104
  %v2110 = vadd.f32 %v1994, %v2104
  %v2111 = vadd.f32 %v1999, %v2104
  %v2112 = vadd.f32 %v2002, %v2104
  %v2113 = vadd.f32 %v2007, %v2104
  %v2114 = vadd.f32 %v2010, %v2104
  %v2115 = vadd.f32 %v2015, %v2104
  %v2116 = vadd.f32 %v2018, %v2104
  %v2117 = vadd.f32 %v2023, %v2104
  %v2118 = vadd.f32 %v2026, %v2104
  %v2119 = vadd.f32 %v2031, %v2104
  %v2120 = vadd.f32 %v2034, %v2104
  %v2121 = vadd.f32 %v2039, %v2104
  %v2122 = vadd.f32 %v2042, %v2104
  %v2123 = vadd.f32 %v2047, %v2104
  %v2124 = vadd.f32 %v2050, %v2104
  %v2125 = vadd.f32 %v2055, %v2104
  %v2126 = vadd.f32 %v2058, %v2104
  %v2127 = vadd.f32 %v2063, %v2104
  %v2128 = vadd.f32 %v2066, %v2104
  %v2129 = vadd.f32 %v2071, %v2104
  %v2130 = vadd.f32 %v2074, %v2104
  %v2131 = vadd.f32 %v2079, %v2104
  %v2132 = vadd.f32 %v2082, %v2104
  %v2133 = vadd.f32 %v2087, %v2104
  %v2134 = vadd.f32 %v2090, %v2104
  %v2135 = vadd.f32 %v2095, %v2104
  %v2136 = vadd.f32 %v2098, %v2104
  %v2137 = vmax.f32 %v2105, 0.0
  %v2138 = vmax.f32 %v2106, 0.0
  %v2139 = vmax.f32 %v2107, 0.0
  %v2140 = vmax.f32 %v2108, 0.0
  %v2141 = vmax.f32 %v2109, 0.0
  %v2142 = vmax.f32 %v2110, 0.0
  %v2143 = vmax.f32 %v2111, 0.0
  %v2144 = vmax.f32 %v2112, 0.0
  %v2145 = vmax.f32 %v2113, 0.0
  %v2146 = vmax.f32 %v2114, 0.0
  %v2147 = vmax.f32 %v2115, 0.0
  %v2148 = vmax.f32 %v2116, 0.0
  %v2149 = vmax.f32 %v2117, 0.0
  %v2150 = vmax.f32 %v2118, 0.0
  %v2151 = vmax.f32 %v2119, 0.0
  %v2152 = vmax.f32 %v2120, 0.0
  %v2153 = vmax.f32 %v2121, 0.0
  %v2154 = vmax.f32 %v2122, 0.0
  %v2155 = vmax.f32 %v2123, 0.0
  %v2156 = vmax.f32 %v2124, 0.0
  %v2157 = vmax.f32 %v2125, 0.0
  %v2158 = vmax.f32 %v2126, 0.0
  %v2159 = vmax.f32 %v2127, 0.0
  %v2160 = vmax.f32 %v2128, 0.0
  %v2161 = vmax.f32 %v2129, 0.0
  %v2162 = vmax.f32 %v2130, 0.0
  %v2163 = vmax.f32 %v2131, 0.0
  %v2164 = vmax.f32 %v2132, 0.0
  %v2165 = vmax.f32 %v2133, 0.0
  %v2166 = vmax.f32 %v2134, 0.0
  %v2167 = vmax.f32 %v2135, 0.0
  %v2168 = vmax.f32 %v2136, 0.0
  %v2169 = vpack.c.bf16 %v2138, %v2137
  %v2170 = vpack.c.bf16 %v2140, %v2139
  %v2171 = vpack.c.bf16 %v2142, %v2141
  %v2172 = vpack.c.bf16 %v2144, %v2143
  %v2173 = vpack.c.bf16 %v2146, %v2145
  %v2174 = vpack.c.bf16 %v2148, %v2147
  %v2175 = vpack.c.bf16 %v2150, %v2149
  %v2176 = vpack.c.bf16 %v2152, %v2151
  %v2177 = vpack.c.bf16 %v2154, %v2153
  %v2178 = vpack.c.bf16 %v2156, %v2155
  %v2179 = vpack.c.bf16 %v2158, %v2157
  %v2180 = vpack.c.bf16 %v2160, %v2159
  %v2181 = vpack.c.bf16 %v2162, %v2161
  %v2182 = vpack.c.bf16 %v2164, %v2163
  %v2183 = vpack.c.bf16 %v2166, %v2165
  %v2184 = vpack.c.bf16 %v2168, %v2167
  %s2185 = scalar_lea.vmem %s1, 384
  %v2186 = vld [vmem:[%s2185] sm:$0xf]
  %v2187 = vld [vmem:[%s2185 + $0x4] sm:$0xf]
  %v2188 = vld [vmem:[%s2185 + $0x8] sm:$0xf]
  %v2189 = vld [vmem:[%s2185 + $0xc] sm:$0xf]
  %v2190 = vld [vmem:[%s2185 + $0x10] sm:$0xf]
  %v2191 = vld [vmem:[%s2185 + $0x14] sm:$0xf]
  %v2192 = vld [vmem:[%s2185 + $0x18] sm:$0xf]
  %v2193 = vld [vmem:[%s2185 + $0x1c] sm:$0xf]
  %v2194 = vld [vmem:[%s2185 + $0x20] sm:$0xf]
  %v2195 = vld [vmem:[%s2185 + $0x24] sm:$0xf]
  %v2196 = vld [vmem:[%s2185 + $0x28] sm:$0xf]
  %v2197 = vld [vmem:[%s2185 + $0x2c] sm:$0xf]
  %v2198 = vld [vmem:[%s2185 + $0x30] sm:$0xf]
  %v2199 = vld [vmem:[%s2185 + $0x34] sm:$0xf]
  %v2200 = vld [vmem:[%s2185 + $0x38] sm:$0xf]
  %v2201 = vld [vmem:[%s2185 + $0x3c] sm:$0xf]
  %v2202 = vlaneseq
  %v2203 = vshrl.u32 %v2202, 7
  %v2204 = vsub.s32 5, %v2203
  %v2205 = vrot.slane %v47, %v2204
  %v2222 = vunpack.c.l.b16 %v2186
  %v2223 = vunpack.c.l.b16 %v2187
  %v2224 = vunpack.c.l.b16 %v2188
  %v2225 = vunpack.c.l.b16 %v2189
  %v2226 = vunpack.c.l.b16 %v2190
  %v2227 = vunpack.c.l.b16 %v2191
  %v2228 = vunpack.c.l.b16 %v2192
  %v2229 = vunpack.c.l.b16 %v2193
  %v2230 = vunpack.c.l.b16 %v2194
  %v2231 = vunpack.c.l.b16 %v2195
  %v2232 = vunpack.c.l.b16 %v2196
  %v2233 = vunpack.c.l.b16 %v2197
  %v2234 = vunpack.c.l.b16 %v2198
  %v2235 = vunpack.c.l.b16 %v2199
  %v2236 = vunpack.c.l.b16 %v2200
  %v2237 = vunpack.c.l.b16 %v2201
  %v2238 = vpack.c.b16 %v2223, %v2222
  %v2239 = vpack.c.b16 %v2225, %v2224
  %v2240 = vpack.c.b16 %v2227, %v2226
  %v2241 = vpack.c.b16 %v2229, %v2228
  %v2242 = vpack.c.b16 %v2231, %v2230
  %v2243 = vpack.c.b16 %v2233, %v2232
  %v2244 = vpack.c.b16 %v2235, %v2234
  %v2245 = vpack.c.b16 %v2237, %v2236
  %2254 = vmatprep.subr.bf16.mxu0 0
  %2255 = vmatpush1.bf16.msra.mxu0 %v2238
  %2256 = vmatprep.subr.bf16.mxu0 0
  %2257 = vmatpush1.bf16.msra.mxu0 %v2239
  %2258 = vmatprep.subr.bf16.mxu0 0
  %2259 = vmatpush1.bf16.msra.mxu0 %v2240
  %2260 = vmatprep.subr.bf16.mxu0 0
  %2261 = vmatpush1.bf16.msra.mxu0 %v2241
  %2262 = vmatprep.subr.bf16.mxu0 0
  %2263 = vmatpush1.bf16.msra.mxu0 %v2242
  %2264 = vmatprep.subr.bf16.mxu0 0
  %2265 = vmatpush1.bf16.msra.mxu0 %v2243
  %2266 = vmatprep.subr.bf16.mxu0 0
  %2267 = vmatpush1.bf16.msra.mxu0 %v2244
  %2268 = vmatprep.subr.bf16.mxu0 0
  %2269 = vmatpush1.bf16.msra.mxu0 %v2245
  %2270 = vmatprep.subr.bf16.mxu0 0
  %2271 = vmatpush1.bf16.msra.mxu0 0
  %2272 = vmatprep.subr.bf16.mxu0 0
  %2273 = vmatpush1.bf16.msra.mxu0 0
  %2274 = vmatprep.subr.bf16.mxu0 0
  %2275 = vmatpush1.bf16.msra.mxu0 0
  %2276 = vmatprep.subr.bf16.mxu0 0
  %2277 = vmatpush1.bf16.msra.mxu0 0
  %2278 = vmatprep.subr.bf16.mxu0 0
  %2279 = vmatpush1.bf16.msra.mxu0 0
  %2280 = vmatprep.subr.bf16.mxu0 0
  %2281 = vmatpush1.bf16.msra.mxu0 0
  %2282 = vmatprep.subr.bf16.mxu0 0
  %2283 = vmatpush1.bf16.msra.mxu0 0
  %2284 = vmatprep.subr.bf16.mxu0 0
  %2285 = vmatpush1.bf16.msra.mxu0 0
  %2286 = vmatprep.mubr.bf16.mxu0 0
  %2287 = vmatmul.mubr.bf16.gmra.mrb[0].mxu0 %v2169
  %v2288 = vpop.f32.mrb[0].mxu0
  %v2289 = vadd.f32 %v2205, %v2288
  %v2290 = vpop.f32.mrb[0].mxu0
  %v2291 = vpop.f32.mrb[0].mxu0
  %v2292 = vadd.f32 %v2205, %v2291
  %v2293 = vpop.f32.mrb[0].mxu0
  %2294 = vmatprep.mubr.bf16.mxu0 0
  %2295 = vmatmul.mubr.bf16.gmra.mrb[0].mxu0 %v2170
  %v2296 = vpop.f32.mrb[0].mxu0
  %v2297 = vadd.f32 %v2205, %v2296
  %v2298 = vpop.f32.mrb[0].mxu0
  %v2299 = vpop.f32.mrb[0].mxu0
  %v2300 = vadd.f32 %v2205, %v2299
  %v2301 = vpop.f32.mrb[0].mxu0
  %2302 = vmatprep.mubr.bf16.mxu0 0
  %2303 = vmatmul.mubr.bf16.gmra.mrb[0].mxu0 %v2171
  %v2304 = vpop.f32.mrb[0].mxu0
  %v2305 = vadd.f32 %v2205, %v2304
  %v2306 = vpop.f32.mrb[0].mxu0
  %v2307 = vpop.f32.mrb[0].mxu0
  %v2308 = vadd.f32 %v2205, %v2307
  %v2309 = vpop.f32.mrb[0].mxu0
  %2310 = vmatprep.mubr.bf16.mxu0 0
  %2311 = vmatmul.mubr.bf16.gmra.mrb[0].mxu0 %v2172
  %v2312 = vpop.f32.mrb[0].mxu0
  %v2313 = vadd.f32 %v2205, %v2312
  %v2314 = vpop.f32.mrb[0].mxu0
  %v2315 = vpop.f32.mrb[0].mxu0
  %v2316 = vadd.f32 %v2205, %v2315
  %v2317 = vpop.f32.mrb[0].mxu0
  %2318 = vmatprep.mubr.bf16.mxu0 0
  %2319 = vmatmul.mubr.bf16.gmra.mrb[0].mxu0 %v2173
  %v2320 = vpop.f32.mrb[0].mxu0
  %v2321 = vadd.f32 %v2205, %v2320
  %v2322 = vpop.f32.mrb[0].mxu0
  %v2323 = vpop.f32.mrb[0].mxu0
  %v2324 = vadd.f32 %v2205, %v2323
  %v2325 = vpop.f32.mrb[0].mxu0
  %2326 = vmatprep.mubr.bf16.mxu0 0
  %2327 = vmatmul.mubr.bf16.gmra.mrb[0].mxu0 %v2174
  %v2328 = vpop.f32.mrb[0].mxu0
  %v2329 = vadd.f32 %v2205, %v2328
  %v2330 = vpop.f32.mrb[0].mxu0
  %v2331 = vpop.f32.mrb[0].mxu0
  %v2332 = vadd.f32 %v2205, %v2331
  %v2333 = vpop.f32.mrb[0].mxu0
  %2334 = vmatprep.mubr.bf16.mxu0 0
  %2335 = vmatmul.mubr.bf16.gmra.mrb[0].mxu0 %v2175
  %v2336 = vpop.f32.mrb[0].mxu0
  %v2337 = vadd.f32 %v2205, %v2336
  %v2338 = vpop.f32.mrb[0].mxu0
  %v2339 = vpop.f32.mrb[0].mxu0
  %v2340 = vadd.f32 %v2205, %v2339
  %v2341 = vpop.f32.mrb[0].mxu0
  %2342 = vmatprep.mubr.bf16.mxu0 0
  %2343 = vmatmul.mubr.bf16.gmra.mrb[0].mxu0 %v2176
  %v2344 = vpop.f32.mrb[0].mxu0
  %v2345 = vadd.f32 %v2205, %v2344
  %v2346 = vpop.f32.mrb[0].mxu0
  %v2347 = vpop.f32.mrb[0].mxu0
  %v2348 = vadd.f32 %v2205, %v2347
  %v2349 = vpop.f32.mrb[0].mxu0
  %2350 = vmatprep.mubr.bf16.mxu0 0
  %2351 = vmatmul.mubr.bf16.gmra.mrb[0].mxu0 %v2177
  %v2352 = vpop.f32.mrb[0].mxu0
  %v2353 = vadd.f32 %v2205, %v2352
  %v2354 = vpop.f32.mrb[0].mxu0
  %v2355 = vpop.f32.mrb[0].mxu0
  %v2356 = vadd.f32 %v2205, %v2355
  %v2357 = vpop.f32.mrb[0].mxu0
  %2358 = vmatprep.mubr.bf16.mxu0 0
  %2359 = vmatmul.mubr.bf16.gmra.mrb[0].mxu0 %v2178
  %v2360 = vpop.f32.mrb[0].mxu0
  %v2361 = vadd.f32 %v2205, %v2360
  %v2362 = vpop.f32.mrb[0].mxu0
  %v2363 = vpop.f32.mrb[0].mxu0
  %v2364 = vadd.f32 %v2205, %v2363
  %v2365 = vpop.f32.mrb[0].mxu0
  %2366 = vmatprep.mubr.bf16.mxu0 0
  %2367 = vmatmul.mubr.bf16.gmra.mrb[0].mxu0 %v2179
  %v2368 = vpop.f32.mrb[0].mxu0
  %v2369 = vadd.f32 %v2205, %v2368
  %v2370 = vpop.f32.mrb[0].mxu0
  %v2371 = vpop.f32.mrb[0].mxu0
  %v2372 = vadd.f32 %v2205, %v2371
  %v2373 = vpop.f32.mrb[0].mxu0
  %2374 = vmatprep.mubr.bf16.mxu0 0
  %2375 = vmatmul.mubr.bf16.gmra.mrb[0].mxu0 %v2180
  %v2376 = vpop.f32.mrb[0].mxu0
  %v2377 = vadd.f32 %v2205, %v2376
  %v2378 = vpop.f32.mrb[0].mxu0
  %v2379 = vpop.f32.mrb[0].mxu0
  %v2380 = vadd.f32 %v2205, %v2379
  %v2381 = vpop.f32.mrb[0].mxu0
  %2382 = vmatprep.mubr.bf16.mxu0 0
  %2383 = vmatmul.mubr.bf16.gmra.mrb[0].mxu0 %v2181
  %v2384 = vpop.f32.mrb[0].mxu0
  %v2385 = vadd.f32 %v2205, %v2384
  %v2386 = vpop.f32.mrb[0].mxu0
  %v2387 = vpop.f32.mrb[0].mxu0
  %v2388 = vadd.f32 %v2205, %v2387
  %v2389 = vpop.f32.mrb[0].mxu0
  %2390 = vmatprep.mubr.bf16.mxu0 0
  %2391 = vmatmul.mubr.bf16.gmra.mrb[0].mxu0 %v2182
  %v2392 = vpop.f32.mrb[0].mxu0
  %v2393 = vadd.f32 %v2205, %v2392
  %v2394 = vpop.f32.mrb[0].mxu0
  %v2395 = vpop.f32.mrb[0].mxu0
  %v2396 = vadd.f32 %v2205, %v2395
  %v2397 = vpop.f32.mrb[0].mxu0
  %2398 = vmatprep.mubr.bf16.mxu0 0
  %2399 = vmatmul.mubr.bf16.gmra.mrb[0].mxu0 %v2183
  %v2400 = vpop.f32.mrb[0].mxu0
  %v2401 = vadd.f32 %v2205, %v2400
  %v2402 = vpop.f32.mrb[0].mxu0
  %v2403 = vpop.f32.mrb[0].mxu0
  %v2404 = vadd.f32 %v2205, %v2403
  %v2405 = vpop.f32.mrb[0].mxu0
  %2406 = vmatprep.mubr.bf16.mxu0 0
  %2407 = vmatmul.mubr.bf16.gmra.mrb[0].mxu0 %v2184
  %v2408 = vpop.f32.mrb[0].mxu0
  %v2409 = vadd.f32 %v2205, %v2408
  %v2410 = vpop.f32.mrb[0].mxu0
  %v2411 = vpop.f32.mrb[0].mxu0
  %v2412 = vadd.f32 %v2205, %v2411
  %v2413 = vpop.f32.mrb[0].mxu0
  %2414 = vdwg.mxu0
  %v2415 = vsub.f32 0.0, %v2289
  %v2416 = vsub.f32 0.0, %v2292
  %v2417 = vsub.f32 0.0, %v2297
  %v2418 = vsub.f32 0.0, %v2300
  %v2419 = vsub.f32 0.0, %v2305
  %v2420 = vsub.f32 0.0, %v2308
  %v2421 = vsub.f32 0.0, %v2313
  %v2422 = vsub.f32 0.0, %v2316
  %v2423 = vsub.f32 0.0, %v2321
  %v2424 = vsub.f32 0.0, %v2324
  %v2425 = vsub.f32 0.0, %v2329
  %v2426 = vsub.f32 0.0, %v2332
  %v2427 = vsub.f32 0.0, %v2337
  %v2428 = vsub.f32 0.0, %v2340
  %v2429 = vsub.f32 0.0, %v2345
  %v2430 = vsub.f32 0.0, %v2348
  %v2431 = vsub.f32 0.0, %v2353
  %v2432 = vsub.f32 0.0, %v2356
  %v2433 = vsub.f32 0.0, %v2361
  %v2434 = vsub.f32 0.0, %v2364
  %v2435 = vsub.f32 0.0, %v2369
  %v2436 = vsub.f32 0.0, %v2372
  %v2437 = vsub.f32 0.0, %v2377
  %v2438 = vsub.f32 0.0, %v2380
  %v2439 = vsub.f32 0.0, %v2385
  %v2440 = vsub.f32 0.0, %v2388
  %v2441 = vsub.f32 0.0, %v2393
  %v2442 = vsub.f32 0.0, %v2396
  %v2443 = vsub.f32 0.0, %v2401
  %v2444 = vsub.f32 0.0, %v2404
  %v2445 = vsub.f32 0.0, %v2409
  %v2446 = vsub.f32 0.0, %v2412
  %v2447 = vmul.f32 %v2415, 1.442695
  %v2448 = vpow.pop %v2447
  %v2449 = vmul.f32 %v2416, 1.442695
  %v2450 = vpow.pop %v2449
  %v2451 = vmul.f32 %v2417, 1.442695
  %v2452 = vpow.pop %v2451
  %v2453 = vmul.f32 %v2418, 1.442695
  %v2454 = vpow.pop %v2453
  %v2455 = vmul.f32 %v2419, 1.442695
  %v2456 = vpow.pop %v2455
  %v2457 = vmul.f32 %v2420, 1.442695
  %v2458 = vpow.pop %v2457
  %v2459 = vmul.f32 %v2421, 1.442695
  %v2460 = vpow.pop %v2459
  %v2461 = vmul.f32 %v2422, 1.442695
  %v2462 = vpow.pop %v2461
  %v2463 = vmul.f32 %v2423, 1.442695
  %v2464 = vpow.pop %v2463
  %v2465 = vmul.f32 %v2424, 1.442695
  %v2466 = vpow.pop %v2465
  %v2467 = vmul.f32 %v2425, 1.442695
  %v2468 = vpow.pop %v2467
  %v2469 = vmul.f32 %v2426, 1.442695
  %v2470 = vpow.pop %v2469
  %v2471 = vmul.f32 %v2427, 1.442695
  %v2472 = vpow.pop %v2471
  %v2473 = vmul.f32 %v2428, 1.442695
  %v2474 = vpow.pop %v2473
  %v2475 = vmul.f32 %v2429, 1.442695
  %v2476 = vpow.pop %v2475
  %v2477 = vmul.f32 %v2430, 1.442695
  %v2478 = vpow.pop %v2477
  %v2479 = vmul.f32 %v2431, 1.442695
  %v2480 = vpow.pop %v2479
  %v2481 = vmul.f32 %v2432, 1.442695
  %v2482 = vpow.pop %v2481
  %v2483 = vmul.f32 %v2433, 1.442695
  %v2484 = vpow.pop %v2483
  %v2485 = vmul.f32 %v2434, 1.442695
  %v2486 = vpow.pop %v2485
  %v2487 = vmul.f32 %v2435, 1.442695
  %v2488 = vpow.pop %v2487
  %v2489 = vmul.f32 %v2436, 1.442695
  %v2490 = vpow.pop %v2489
  %v2491 = vmul.f32 %v2437, 1.442695
  %v2492 = vpow.pop %v2491
  %v2493 = vmul.f32 %v2438, 1.442695
  %v2494 = vpow.pop %v2493
  %v2495 = vmul.f32 %v2439, 1.442695
  %v2496 = vpow.pop %v2495
  %v2497 = vmul.f32 %v2440, 1.442695
  %v2498 = vpow.pop %v2497
  %v2499 = vmul.f32 %v2441, 1.442695
  %v2500 = vpow.pop %v2499
  %v2501 = vmul.f32 %v2442, 1.442695
  %v2502 = vpow.pop %v2501
  %v2503 = vmul.f32 %v2443, 1.442695
  %v2504 = vpow.pop %v2503
  %v2505 = vmul.f32 %v2444, 1.442695
  %v2506 = vpow.pop %v2505
  %v2507 = vmul.f32 %v2445, 1.442695
  %v2508 = vpow.pop %v2507
  %v2509 = vmul.f32 %v2446, 1.442695
  %v2510 = vpow.pop %v2509
  %v2511 = vadd.f32 %v2448, 1.0
  %v2512 = vadd.f32 %v2450, 1.0
  %v2513 = vadd.f32 %v2452, 1.0
  %v2514 = vadd.f32 %v2454, 1.0
  %v2515 = vadd.f32 %v2456, 1.0
  %v2516 = vadd.f32 %v2458, 1.0
  %v2517 = vadd.f32 %v2460, 1.0
  %v2518 = vadd.f32 %v2462, 1.0
  %v2519 = vadd.f32 %v2464, 1.0
  %v2520 = vadd.f32 %v2466, 1.0
  %v2521 = vadd.f32 %v2468, 1.0
  %v2522 = vadd.f32 %v2470, 1.0
  %v2523 = vadd.f32 %v2472, 1.0
  %v2524 = vadd.f32 %v2474, 1.0
  %v2525 = vadd.f32 %v2476, 1.0
  %v2526 = vadd.f32 %v2478, 1.0
  %v2527 = vadd.f32 %v2480, 1.0
  %v2528 = vadd.f32 %v2482, 1.0
  %v2529 = vadd.f32 %v2484, 1.0
  %v2530 = vadd.f32 %v2486, 1.0
  %v2531 = vadd.f32 %v2488, 1.0
  %v2532 = vadd.f32 %v2490, 1.0
  %v2533 = vadd.f32 %v2492, 1.0
  %v2534 = vadd.f32 %v2494, 1.0
  %v2535 = vadd.f32 %v2496, 1.0
  %v2536 = vadd.f32 %v2498, 1.0
  %v2537 = vadd.f32 %v2500, 1.0
  %v2538 = vadd.f32 %v2502, 1.0
  %v2539 = vadd.f32 %v2504, 1.0
  %v2540 = vadd.f32 %v2506, 1.0
  %v2541 = vadd.f32 %v2508, 1.0
  %v2542 = vadd.f32 %v2510, 1.0
  %v2543 = vrcp.pop %v2511
  %v2544 = vrcp.pop %v2512
  %v2545 = vrcp.pop %v2513
  %v2546 = vrcp.pop %v2514
  %v2547 = vrcp.pop %v2515
  %v2548 = vrcp.pop %v2516
  %v2549 = vrcp.pop %v2517
  %v2550 = vrcp.pop %v2518
  %v2551 = vrcp.pop %v2519
  %v2552 = vrcp.pop %v2520
  %v2553 = vrcp.pop %v2521
  %v2554 = vrcp.pop %v2522
  %v2555 = vrcp.pop %v2523
  %v2556 = vrcp.pop %v2524
  %v2557 = vrcp.pop %v2525
  %v2558 = vrcp.pop %v2526
  %v2559 = vrcp.pop %v2527
  %v2560 = vrcp.pop %v2528
  %v2561 = vrcp.pop %v2529
  %v2562 = vrcp.pop %v2530
  %v2563 = vrcp.pop %v2531
  %v2564 = vrcp.pop %v2532
  %v2565 = vrcp.pop %v2533
  %v2566 = vrcp.pop %v2534
  %v2567 = vrcp.pop %v2535
  %v2568 = vrcp.pop %v2536
  %v2569 = vrcp.pop %v2537
  %v2570 = vrcp.pop %v2538
  %v2571 = vrcp.pop %v2539
  %v2572 = vrcp.pop %v2540
  %v2573 = vrcp.pop %v2541
  %v2574 = vrcp.pop %v2542
  %2575 = vrot.lane.b32.xlu0 %v1001, 48
  %v2576 = vpop.permute.xlu0 %2575
  %2577 = vrot.lane.b32.xlu0 %v1004, 48
  %v2578 = vpop.permute.xlu0 %2577
  %2579 = vrot.lane.b32.xlu0 %v1009, 48
  %v2580 = vpop.permute.xlu0 %2579
  %2581 = vrot.lane.b32.xlu0 %v1012, 48
  %v2582 = vpop.permute.xlu0 %2581
  %2583 = vrot.lane.b32.xlu0 %v1017, 48
  %v2584 = vpop.permute.xlu0 %2583
  %2585 = vrot.lane.b32.xlu0 %v1020, 48
  %v2586 = vpop.permute.xlu0 %2585
  %2587 = vrot.lane.b32.xlu0 %v1025, 48
  %v2588 = vpop.permute.xlu0 %2587
  %2589 = vrot.lane.b32.xlu0 %v1028, 48
  %v2590 = vpop.permute.xlu0 %2589
  %2591 = vrot.lane.b32.xlu0 %v1033, 48
  %v2592 = vpop.permute.xlu0 %2591
  %2593 = vrot.lane.b32.xlu0 %v1036, 48
  %v2594 = vpop.permute.xlu0 %2593
  %2595 = vrot.lane.b32.xlu0 %v1041, 48
  %v2596 = vpop.permute.xlu0 %2595
  %2597 = vrot.lane.b32.xlu0 %v1044, 48
  %v2598 = vpop.permute.xlu0 %2597
  %2599 = vrot.lane.b32.xlu0 %v1049, 48
  %v2600 = vpop.permute.xlu0 %2599
  %2601 = vrot.lane.b32.xlu0 %v1052, 48
  %v2602 = vpop.permute.xlu0 %2601
  %2603 = vrot.lane.b32.xlu0 %v1057, 48
  %v2604 = vpop.permute.xlu0 %2603
  %2605 = vrot.lane.b32.xlu0 %v1060, 48
  %v2606 = vpop.permute.xlu0 %2605
  %2607 = vrot.lane.b32.xlu0 %v1065, 48
  %v2608 = vpop.permute.xlu0 %2607
  %2609 = vrot.lane.b32.xlu0 %v1068, 48
  %v2610 = vpop.permute.xlu0 %2609
  %2611 = vrot.lane.b32.xlu0 %v1073, 48
  %v2612 = vpop.permute.xlu0 %2611
  %2613 = vrot.lane.b32.xlu0 %v1076, 48
  %v2614 = vpop.permute.xlu0 %2613
  %2615 = vrot.lane.b32.xlu0 %v1081, 48
  %v2616 = vpop.permute.xlu0 %2615
  %2617 = vrot.lane.b32.xlu0 %v1084, 48
  %v2618 = vpop.permute.xlu0 %2617
  %2619 = vrot.lane.b32.xlu0 %v1089, 48
  %v2620 = vpop.permute.xlu0 %2619
  %2621 = vrot.lane.b32.xlu0 %v1092, 48
  %v2622 = vpop.permute.xlu0 %2621
  %2623 = vrot.lane.b32.xlu0 %v1097, 48
  %v2624 = vpop.permute.xlu0 %2623
  %2625 = vrot.lane.b32.xlu0 %v1100, 48
  %v2626 = vpop.permute.xlu0 %2625
  %2627 = vrot.lane.b32.xlu0 %v1105, 48
  %v2628 = vpop.permute.xlu0 %2627
  %2629 = vrot.lane.b32.xlu0 %v1108, 48
  %v2630 = vpop.permute.xlu0 %2629
  %2631 = vrot.lane.b32.xlu0 %v1113, 48
  %v2632 = vpop.permute.xlu0 %2631
  %2633 = vrot.lane.b32.xlu0 %v1116, 48
  %v2634 = vpop.permute.xlu0 %2633
  %2635 = vrot.lane.b32.xlu0 %v1121, 48
  %v2636 = vpop.permute.xlu0 %2635
  %2637 = vrot.lane.b32.xlu0 %v1124, 48
  %v2638 = vpop.permute.xlu0 %2637
  %2671 = vrot.lane.b32.xlu0 %v1001, 80
  %v2672 = vpop.permute.xlu0 %2671
  %2673 = vrot.lane.b32.xlu0 %v1004, 80
  %v2674 = vpop.permute.xlu0 %2673
  %2675 = vrot.lane.b32.xlu0 %v1009, 80
  %v2676 = vpop.permute.xlu0 %2675
  %2677 = vrot.lane.b32.xlu0 %v1012, 80
  %v2678 = vpop.permute.xlu0 %2677
  %2679 = vrot.lane.b32.xlu0 %v1017, 80
  %v2680 = vpop.permute.xlu0 %2679
  %2681 = vrot.lane.b32.xlu0 %v1020, 80
  %v2682 = vpop.permute.xlu0 %2681
  %2683 = vrot.lane.b32.xlu0 %v1025, 80
  %v2684 = vpop.permute.xlu0 %2683
  %2685 = vrot.lane.b32.xlu0 %v1028, 80
  %v2686 = vpop.permute.xlu0 %2685
  %2687 = vrot.lane.b32.xlu0 %v1033, 80
  %v2688 = vpop.permute.xlu0 %2687
  %2689 = vrot.lane.b32.xlu0 %v1036, 80
  %v2690 = vpop.permute.xlu0 %2689
  %2691 = vrot.lane.b32.xlu0 %v1041, 80
  %v2692 = vpop.permute.xlu0 %2691
  %2693 = vrot.lane.b32.xlu0 %v1044, 80
  %v2694 = vpop.permute.xlu0 %2693
  %2695 = vrot.lane.b32.xlu0 %v1049, 80
  %v2696 = vpop.permute.xlu0 %2695
  %2697 = vrot.lane.b32.xlu0 %v1052, 80
  %v2698 = vpop.permute.xlu0 %2697
  %2699 = vrot.lane.b32.xlu0 %v1057, 80
  %v2700 = vpop.permute.xlu0 %2699
  %2701 = vrot.lane.b32.xlu0 %v1060, 80
  %v2702 = vpop.permute.xlu0 %2701
  %2703 = vrot.lane.b32.xlu0 %v1065, 80
  %v2704 = vpop.permute.xlu0 %2703
  %2705 = vrot.lane.b32.xlu0 %v1068, 80
  %v2706 = vpop.permute.xlu0 %2705
  %2707 = vrot.lane.b32.xlu0 %v1073, 80
  %v2708 = vpop.permute.xlu0 %2707
  %2709 = vrot.lane.b32.xlu0 %v1076, 80
  %v2710 = vpop.permute.xlu0 %2709
  %2711 = vrot.lane.b32.xlu0 %v1081, 80
  %v2712 = vpop.permute.xlu0 %2711
  %2713 = vrot.lane.b32.xlu0 %v1084, 80
  %v2714 = vpop.permute.xlu0 %2713
  %2715 = vrot.lane.b32.xlu0 %v1089, 80
  %v2716 = vpop.permute.xlu0 %2715
  %2717 = vrot.lane.b32.xlu0 %v1092, 80
  %v2718 = vpop.permute.xlu0 %2717
  %2719 = vrot.lane.b32.xlu0 %v1097, 80
  %v2720 = vpop.permute.xlu0 %2719
  %2721 = vrot.lane.b32.xlu0 %v1100, 80
  %v2722 = vpop.permute.xlu0 %2721
  %2723 = vrot.lane.b32.xlu0 %v1105, 80
  %v2724 = vpop.permute.xlu0 %2723
  %2725 = vrot.lane.b32.xlu0 %v1108, 80
  %v2726 = vpop.permute.xlu0 %2725
  %2727 = vrot.lane.b32.xlu0 %v1113, 80
  %v2728 = vpop.permute.xlu0 %2727
  %2729 = vrot.lane.b32.xlu0 %v1116, 80
  %v2730 = vpop.permute.xlu0 %2729
  %2731 = vrot.lane.b32.xlu0 %v1121, 80
  %v2732 = vpop.permute.xlu0 %2731
  %2733 = vrot.lane.b32.xlu0 %v1124, 80
  %v2734 = vpop.permute.xlu0 %2733
  %vm2767 = vcmask 523264
  %v2768 = vsel %vm2767, %v2543, %v2576
  %v2769 = vsel %vm2767, %v2544, %v2578
  %v2770 = vsel %vm2767, %v2545, %v2580
  %v2771 = vsel %vm2767, %v2546, %v2582
  %v2772 = vsel %vm2767, %v2547, %v2584
  %v2773 = vsel %vm2767, %v2548, %v2586
  %v2774 = vsel %vm2767, %v2549, %v2588
  %v2775 = vsel %vm2767, %v2550, %v2590
  %v2776 = vsel %vm2767, %v2551, %v2592
  %v2777 = vsel %vm2767, %v2552, %v2594
  %v2778 = vsel %vm2767, %v2553, %v2596
  %v2779 = vsel %vm2767, %v2554, %v2598
  %v2780 = vsel %vm2767, %v2555, %v2600
  %v2781 = vsel %vm2767, %v2556, %v2602
  %v2782 = vsel %vm2767, %v2557, %v2604
  %v2783 = vsel %vm2767, %v2558, %v2606
  %v2784 = vsel %vm2767, %v2559, %v2608
  %v2785 = vsel %vm2767, %v2560, %v2610
  %v2786 = vsel %vm2767, %v2561, %v2612
  %v2787 = vsel %vm2767, %v2562, %v2614
  %v2788 = vsel %vm2767, %v2563, %v2616
  %v2789 = vsel %vm2767, %v2564, %v2618
  %v2790 = vsel %vm2767, %v2565, %v2620
  %v2791 = vsel %vm2767, %v2566, %v2622
  %v2792 = vsel %vm2767, %v2567, %v2624
  %v2793 = vsel %vm2767, %v2568, %v2626
  %v2794 = vsel %vm2767, %v2569, %v2628
  %v2795 = vsel %vm2767, %v2570, %v2630
  %v2796 = vsel %vm2767, %v2571, %v2632
  %v2797 = vsel %vm2767, %v2572, %v2634
  %v2798 = vsel %vm2767, %v2573, %v2636
  %v2799 = vsel %vm2767, %v2574, %v2638
  %vm2800 = vcmask 654336
  %v2801 = vsel %vm2800, %v2768, %v2672
  %v2802 = vsel %vm2800, %v2769, %v2674
  %v2803 = vsel %vm2800, %v2770, %v2676
  %v2804 = vsel %vm2800, %v2771, %v2678
  %v2805 = vsel %vm2800, %v2772, %v2680
  %v2806 = vsel %vm2800, %v2773, %v2682
  %v2807 = vsel %vm2800, %v2774, %v2684
  %v2808 = vsel %vm2800, %v2775, %v2686
  %v2809 = vsel %vm2800, %v2776, %v2688
  %v2810 = vsel %vm2800, %v2777, %v2690
  %v2811 = vsel %vm2800, %v2778, %v2692
  %v2812 = vsel %vm2800, %v2779, %v2694
  %v2813 = vsel %vm2800, %v2780, %v2696
  %v2814 = vsel %vm2800, %v2781, %v2698
  %v2815 = vsel %vm2800, %v2782, %v2700
  %v2816 = vsel %vm2800, %v2783, %v2702
  %v2817 = vsel %vm2800, %v2784, %v2704
  %v2818 = vsel %vm2800, %v2785, %v2706
  %v2819 = vsel %vm2800, %v2786, %v2708
  %v2820 = vsel %vm2800, %v2787, %v2710
  %v2821 = vsel %vm2800, %v2788, %v2712
  %v2822 = vsel %vm2800, %v2789, %v2714
  %v2823 = vsel %vm2800, %v2790, %v2716
  %v2824 = vsel %vm2800, %v2791, %v2718
  %v2825 = vsel %vm2800, %v2792, %v2720
  %v2826 = vsel %vm2800, %v2793, %v2722
  %v2827 = vsel %vm2800, %v2794, %v2724
  %v2828 = vsel %vm2800, %v2795, %v2726
  %v2829 = vsel %vm2800, %v2796, %v2728
  %v2830 = vsel %vm2800, %v2797, %v2730
  %v2831 = vsel %vm2800, %v2798, %v2732
  %v2832 = vsel %vm2800, %v2799, %v2734
  %vm2833 = vcmask 785408
  %v2834 = vsel %vm2833, %v2801, 0.0
  %v2835 = vsel %vm2833, %v2802, 0.0
  %v2836 = vsel %vm2833, %v2803, 0.0
  %v2837 = vsel %vm2833, %v2804, 0.0
  %v2838 = vsel %vm2833, %v2805, 0.0
  %v2839 = vsel %vm2833, %v2806, 0.0
  %v2840 = vsel %vm2833, %v2807, 0.0
  %v2841 = vsel %vm2833, %v2808, 0.0
  %v2842 = vsel %vm2833, %v2809, 0.0
  %v2843 = vsel %vm2833, %v2810, 0.0
  %v2844 = vsel %vm2833, %v2811, 0.0
  %v2845 = vsel %vm2833, %v2812, 0.0
  %v2846 = vsel %vm2833, %v2813, 0.0
  %v2847 = vsel %vm2833, %v2814, 0.0
  %v2848 = vsel %vm2833, %v2815, 0.0
  %v2849 = vsel %vm2833, %v2816, 0.0
  %v2850 = vsel %vm2833, %v2817, 0.0
  %v2851 = vsel %vm2833, %v2818, 0.0
  %v2852 = vsel %vm2833, %v2819, 0.0
  %v2853 = vsel %vm2833, %v2820, 0.0
  %v2854 = vsel %vm2833, %v2821, 0.0
  %v2855 = vsel %vm2833, %v2822, 0.0
  %v2856 = vsel %vm2833, %v2823, 0.0
  %v2857 = vsel %vm2833, %v2824, 0.0
  %v2858 = vsel %vm2833, %v2825, 0.0
  %v2859 = vsel %vm2833, %v2826, 0.0
  %v2860 = vsel %vm2833, %v2827, 0.0
  %v2861 = vsel %vm2833, %v2828, 0.0
  %v2862 = vsel %vm2833, %v2829, 0.0
  %v2863 = vsel %vm2833, %v2830, 0.0
  %v2864 = vsel %vm2833, %v2831, 0.0
  %v2865 = vsel %vm2833, %v2832, 0.0
  %2866 = vst [vmem:[%s3] sm:$0xff] %v2834
  %2867 = vst [vmem:[%s3 + $0x8] sm:$0xff] %v2835
  %2868 = vst [vmem:[%s3 + $0x10] sm:$0xff] %v2836
  %2869 = vst [vmem:[%s3 + $0x18] sm:$0xff] %v2837
  %2870 = vst [vmem:[%s3 + $0x20] sm:$0xff] %v2838
  %2871 = vst [vmem:[%s3 + $0x28] sm:$0xff] %v2839
  %2872 = vst [vmem:[%s3 + $0x30] sm:$0xff] %v2840
  %2873 = vst [vmem:[%s3 + $0x38] sm:$0xff] %v2841
  %2874 = vst [vmem:[%s3 + $0x40] sm:$0xff] %v2842
  %2875 = vst [vmem:[%s3 + $0x48] sm:$0xff] %v2843
  %2876 = vst [vmem:[%s3 + $0x50] sm:$0xff] %v2844
  %2877 = vst [vmem:[%s3 + $0x58] sm:$0xff] %v2845
  %2878 = vst [vmem:[%s3 + $0x60] sm:$0xff] %v2846
  %2879 = vst [vmem:[%s3 + $0x68] sm:$0xff] %v2847
  %2880 = vst [vmem:[%s3 + $0x70] sm:$0xff] %v2848
  %2881 = vst [vmem:[%s3 + $0x78] sm:$0xff] %v2849
  %2882 = vst [vmem:[%s3 + $0x80] sm:$0xff] %v2850
  %2883 = vst [vmem:[%s3 + $0x88] sm:$0xff] %v2851
  %2884 = vst [vmem:[%s3 + $0x90] sm:$0xff] %v2852
  %2885 = vst [vmem:[%s3 + $0x98] sm:$0xff] %v2853
  %2886 = vst [vmem:[%s3 + $0xa0] sm:$0xff] %v2854
  %2887 = vst [vmem:[%s3 + $0xa8] sm:$0xff] %v2855
  %2888 = vst [vmem:[%s3 + $0xb0] sm:$0xff] %v2856
  %2889 = vst [vmem:[%s3 + $0xb8] sm:$0xff] %v2857
  %2890 = vst [vmem:[%s3 + $0xc0] sm:$0xff] %v2858
  %2891 = vst [vmem:[%s3 + $0xc8] sm:$0xff] %v2859
  %2892 = vst [vmem:[%s3 + $0xd0] sm:$0xff] %v2860
  %2893 = vst [vmem:[%s3 + $0xd8] sm:$0xff] %v2861
  %2894 = vst [vmem:[%s3 + $0xe0] sm:$0xff] %v2862
  %2895 = vst [vmem:[%s3 + $0xe8] sm:$0xff] %v2863
  %2896 = vst [vmem:[%s3 + $0xf0] sm:$0xff] %v2864
  %2897 = vst [vmem:[%s3 + $0xf8] sm:$0xff] %v2865
  // Predicated region
  $region14: #{vae_forward.1} parent=0 // pred_check
    _
  $region15: #{vae_forward.1} parent=0 // pred_check_branch
    %2899 = sbr.rel (0) target = $region17
  $region16: #{vae_forward.1} parent=0 // pred_region
    _
  $region17: #{vae_forward.1} parent=0 // pred_fallthru
    _
  // Predicated region
  $region18: #{vae_forward.1} parent=0 // pred_check
    _
  $region19: #{vae_forward.1} parent=0 // pred_check_branch
    %2901 = sbr.rel (0) target = $region21
  $region20: #{vae_forward.1} parent=0 // pred_region
    _
  $region21: #{vae_forward.1} parent=0 // pred_fallthru
    _

</llo_original>
